<compile_context>
chip_gen: v5e
topology: v5e:2x2
jax: 0.10.0
libtpu: 0.0.40
codegen_flags: <defaults>
</compile_context>

<pallas_src>
import functools

import jax
import jax.numpy as jnp
from jax.experimental import pallas as pl
from jax.experimental.pallas import tpu as pltpu


# ----------------------------- small helpers -------------------------------

def _log_softmax_rows(z):
    m = jnp.max(z, axis=1, keepdims=True)
    s = z - m
    return s - jnp.log(jnp.sum(jnp.exp(s), axis=1, keepdims=True))


def _place_gate_cols(w, H, direction):
    """w: (din, 4H) in gate order (i,f,g,o).  Returns (din, 8H) with gate g
    placed at columns (2*g + direction)*H, zeros elsewhere (0 = fwd, 1 = bwd)."""
    din = w.shape[0]
    out = jnp.zeros((din, 8 * H), w.dtype)
    for g in range(4):
        c0 = (2 * g + direction) * H
        out = out.at[:, c0:c0 + H].set(w[:, g * H:(g + 1) * H])
    return out


def _per_sentence_spec(shape):
    zeros = (0,) * len(shape)
    return pl.BlockSpec((None,) + tuple(shape), lambda b: (b,) + zeros)


def _replicated_spec(shape):
    zeros = (0,) * len(shape)
    return pl.BlockSpec(tuple(shape), lambda b: zeros)


# --------------------------- the fused kernel -------------------------------

def ctb_tagger_kernel(x_pair_ref, cmask_ref, wemb_ref, wmask_ref,
                      c_wih_ref, c_whh_ref, c_b_ref,
                      w_wih_ref, w_whh_ref, w_b_ref,
                      wp_ref, bp_ref,
                      out1_ref, out2_ref,
                      *, H, T, max_len, P_pad):
    H2 = 2 * H                     # hidden_dim (state width, [fwd | bwd])
    f32 = jnp.float32
    bf16 = jnp.bfloat16

    # ---------------- char-composition BiLSTM, batched over words -----------
    # Hoisted input projection for both directions of every word/char step:
    # one (max_len*T, 2*char_dim) x (2*char_dim, 8H) bf16 matmul + f32 bias.
    proj_flat = jnp.dot(x_pair_ref[...], c_wih_ref[...],
                        preferred_element_type=f32) + c_b_ref[...]    # (L*T, 8H)
    whh_c = c_whh_ref[...]                                            # (2H, 8H) bf16
    cmask = cmask_ref[...] != 0.0                                     # (L*T, 1) bool

    h = jnp.zeros((T, H2), f32)
    c = jnp.zeros((T, H2), f32)
    # TODO(synk): switch to lax.fori_loop + scratch-resident projection for very
    # long char sequences; static unroll == unroll=True at these sizes.
    for t in range(max_len):
        # T is padded to a multiple of 8, so these row slices are sublane-aligned.
        gates = proj_flat[t * T:(t + 1) * T, :] + jnp.dot(
            h.astype(bf16), whh_c, preferred_element_type=f32)        # (T, 8H)
        sig = jax.nn.sigmoid(gates)                 # one EUP pass over all gates
        g_act = jnp.tanh(gates[:, 2 * H2:3 * H2])
        c_new = sig[:, H2:2 * H2] * c + sig[:, 0:H2] * g_act
        h_new = sig[:, 3 * H2:4 * H2] * jnp.tanh(c_new)
        m = cmask[t * T:(t + 1) * T, :]             # (T, 1) bool, aligned slice
        h = jnp.where(m, h_new, h)
        c = jnp.where(m, c_new, c)
    # h == concat(final fwd hidden, final bwd hidden) per word, exactly what the
    # PyTorch code extracts from lstm_out[-1,:,0] / lstm_out[0,:,1].
    char_feats = h                                                    # (T, 2H) f32

    # ---------------- word-level BiLSTM (fused directions) ------------------
    x_w = jnp.concatenate([wemb_ref[...], char_feats.astype(bf16)], axis=1)  # (T, D2) bf16
    # Reverse the word order with a tiny anti-diagonal permutation matmul
    # (exact row selection; avoids an in-kernel lax.rev).
    row = jax.lax.broadcasted_iota(jnp.int32, (T, T), 0)
    col = jax.lax.broadcasted_iota(jnp.int32, (T, T), 1)
    perm = (row + col == T - 1).astype(bf16)
    x_w_rev = jnp.dot(perm, x_w, preferred_element_type=f32).astype(bf16)
    # Hoisted paired projection for both directions + bias, done once.
    proj_sum = jnp.dot(jnp.concatenate([x_w, x_w_rev], axis=1), w_wih_ref[...],
                       preferred_element_type=f32) + w_b_ref[...]     # (T, 8H)
    whh_w = w_whh_ref[...]                                            # (2H, 8H) bf16
    wmask = wmask_ref[...] != 0.0                   # (T, 2H) bool: [fwd@s | bwd@T-1-s]

    hw = jnp.zeros((1, H2), f32)
    cw = jnp.zeros((1, H2), f32)
    hf_rows = [None] * T
    hb_rows = [None] * T
    # TODO(synk): lax.fori_loop + scratch stores for very long sentences.
    for s in range(T):
        gates = proj_sum[s:s + 1, :] + jnp.dot(hw.astype(bf16), whh_w,
                                               preferred_element_type=f32)
        sig = jax.nn.sigmoid(gates)
        g_act = jnp.tanh(gates[:, 2 * H2:3 * H2])
        cw_new = sig[:, H2:2 * H2] * cw + sig[:, 0:H2] * g_act
        hw_new = sig[:, 3 * H2:4 * H2] * jnp.tanh(cw_new)
        m = wmask[s:s + 1, :]                       # freeze state on padded words
        hw = jnp.where(m, hw_new, hw)
        cw = jnp.where(m, cw_new, cw)
        hf_rows[s] = hw[:, 0:H]                     # fwd hidden belongs to word s
        hb_rows[T - 1 - s] = hw[:, H:H2]            # bwd hidden belongs to word T-1-s
    # Register-resident hidden matrix (no VMEM scratch, no masked stores/reload).
    hid = jnp.concatenate([jnp.concatenate(hf_rows, axis=0),
                           jnp.concatenate(hb_rows, axis=0)], axis=1)  # (T, 2H) f32

    # ---------------- fused tag heads + log_softmax (lane-dense) ------------
    z = jnp.dot(hid.astype(bf16), wp_ref[...],
                preferred_element_type=f32) + bp_ref[...]              # (T, 2*P_pad)
    out1_ref[...] = _log_softmax_rows(z[:, 0:P_pad])
    out2_ref[...] = _log_softmax_rows(z[:, P_pad:2 * P_pad])


# ------------------------------- wrapper ------------------------------------

class CTBTaggerPallas:
    def __init__(self, char_embedding_dim, word_embedding_dim, hidden_dim,
                 char_size, word_size, tagset_size_pos, tagset_size_pos2, key):
        assert hidden_dim % 2 == 0
        self.hidden_dim = hidden_dim
        self.H = hidden_dim // 2
        self.char_dim = char_embedding_dim
        self.word_dim = word_embedding_dim
        self.P1 = tagset_size_pos
        self.P2 = tagset_size_pos2
        self.P_pad = ((max(tagset_size_pos, tagset_size_pos2) + 127) // 128) * 128
        H = self.H
        ks = jax.random.split(key, 18)

        def u(k, shape, scale):
            return (jax.random.uniform(k, shape, jnp.float32) * 2.0 - 1.0) * scale

        # embeddings (N(0,1) like nn.Embedding default)
        self.char_emb_tbl = jax.random.normal(ks[0], (char_size, char_embedding_dim), jnp.float32)
        self.word_emb_tbl = jax.random.normal(ks[1], (word_size, word_embedding_dim), jnp.float32)

        s = 0.25
        # char BiLSTM per-direction weights ([in_dim, 4H], b = b_ih + b_hh)
        c_w_ih_f = u(ks[2], (char_embedding_dim, 4 * H), s)
        c_w_hh_f = u(ks[3], (H, 4 * H), s)
        c_b_f = u(ks[4], (1, 4 * H), s)
        c_w_ih_b = u(ks[5], (char_embedding_dim, 4 * H), s)
        c_w_hh_b = u(ks[6], (H, 4 * H), s)
        c_b_b = u(ks[7], (1, 4 * H), s)

        # word-level BiLSTM over [word_emb ; char_feats]
        d2 = word_embedding_dim + hidden_dim
        w_w_ih_f = u(ks[8], (d2, 4 * H), s)
        w_w_hh_f = u(ks[9], (H, 4 * H), s)
        w_b_f = u(ks[10], (1, 4 * H), s)
        w_w_ih_b = u(ks[11], (d2, 4 * H), s)
        w_w_hh_b = u(ks[12], (H, 4 * H), s)
        w_b_b = u(ks[13], (1, 4 * H), s)

        # tag heads
        wp1 = u(ks[14], (hidden_dim, tagset_size_pos), 0.3)
        bp1 = u(ks[15], (1, tagset_size_pos), 0.3)
        wp2 = u(ks[16], (hidden_dim, tagset_size_pos2), 0.3)
        bp2 = u(ks[17], (1, tagset_size_pos2), 0.3)

        bf16 = jnp.bfloat16
        # ---- fused / interleaved layouts fed to the kernel (weights in bf16) ----
        # char BiLSTM: paired-input weight over [x_fwd | x_rev], block-diag W_hh
        self.c_wih = jnp.concatenate([_place_gate_cols(c_w_ih_f, H, 0),
                                      _place_gate_cols(c_w_ih_b, H, 1)], axis=0).astype(bf16)
        self.c_whh = jnp.concatenate([_place_gate_cols(c_w_hh_f, H, 0),
                                      _place_gate_cols(c_w_hh_b, H, 1)], axis=0).astype(bf16)
        self.c_b = _place_gate_cols(c_b_f, H, 0) + _place_gate_cols(c_b_b, H, 1)   # f32

        # word BiLSTM: paired-input weight over [x_w | x_w_reversed], block-diag W_hh
        self.w_wih = jnp.concatenate([_place_gate_cols(w_w_ih_f, H, 0),
                                      _place_gate_cols(w_w_ih_b, H, 1)], axis=0).astype(bf16)
        self.w_whh = jnp.concatenate([_place_gate_cols(w_w_hh_f, H, 0),
                                      _place_gate_cols(w_w_hh_b, H, 1)], axis=0).astype(bf16)
        self.w_b = _place_gate_cols(w_b_f, H, 0) + _place_gate_cols(w_b_b, H, 1)    # f32

        # tag heads fused + lane-padded to P_pad; pad bias = -1e30 so an unmasked
        # row log_softmax is exact on the valid columns.
        P_pad = self.P_pad
        wp_all = jnp.zeros((hidden_dim, 2 * P_pad), jnp.float32)
        wp_all = wp_all.at[:, :tagset_size_pos].set(wp1)
        wp_all = wp_all.at[:, P_pad:P_pad + tagset_size_pos2].set(wp2)
        bp_all = jnp.full((1, 2 * P_pad), -1e30, jnp.float32)
        bp_all = bp_all.at[:, :tagset_size_pos].set(bp1)
        bp_all = bp_all.at[:, P_pad:P_pad + tagset_size_pos2].set(bp2)
        self.wp_all = wp_all.astype(bf16)
        self.bp_all = bp_all                                                         # f32

        # jit the whole forward (embedding gathers + masks + pallas_call + slicing)
        self._jit_forward = jax.jit(self._forward)

    # --- batched forward: text_word_seq (B,T0), text_char_ids (B,T0,L),
    #     char_lens (B,T0), sent_lens (B,) ---
    def _forward(self, text_word_seq, text_char_ids, char_lens, sent_lens):
        B, T0 = text_word_seq.shape
        L = text_char_ids.shape[2]
        H, Hd = self.H, self.hidden_dim
        Cd, Wd = self.char_dim, self.word_dim
        P_pad = self.P_pad
        bf16 = jnp.bfloat16

        # pad the word axis to a sublane multiple so in-kernel row slices align
        T = ((T0 + 7) // 8) * 8
        pad_t = T - T0
        if pad_t:
            text_word_seq = jnp.pad(text_word_seq, ((0, 0), (0, pad_t)))
            text_char_ids = jnp.pad(text_char_ids, ((0, 0), (0, pad_t), (0, 0)))
            char_lens = jnp.pad(char_lens, ((0, 0), (0, pad_t)))

        # embedding gathers + per-word char reversal + masks (jitted glue)
        word_emb = self.word_emb_tbl[text_word_seq].astype(bf16)            # (B,T,Wd)
        char_emb = self.char_emb_tbl[text_char_ids]                         # (B,T,L,Cd)
        ar = jnp.arange(L)
        rev_idx = char_lens[:, :, None] - 1 - ar[None, None, :]             # (B,T,L)
        rev_c = jnp.clip(rev_idx, 0, L - 1)
        char_emb_rev = jnp.take_along_axis(char_emb, rev_c[..., None], axis=2)
        char_emb_rev = jnp.where(rev_idx[..., None] >= 0, char_emb_rev, 0.0)
        x_pair = jnp.concatenate([char_emb, char_emb_rev], axis=3)          # (B,T,L,2Cd)
        x_pair = jnp.transpose(x_pair, (0, 2, 1, 3)).reshape(B, L * T, 2 * Cd).astype(bf16)

        cmask = (ar[None, None, :] < char_lens[:, :, None]).astype(jnp.float32)  # (B,T,L)
        cmask = jnp.transpose(cmask, (0, 2, 1)).reshape(B, L * T, 1)

        tpos = jnp.arange(T)
        valid_f = (tpos[None, :] < sent_lens[:, None]).astype(jnp.float32)        # (B,T)
        valid_b = ((T - 1 - tpos)[None, :] < sent_lens[:, None]).astype(jnp.float32)
        wmask = jnp.concatenate([jnp.repeat(valid_f[:, :, None], H, axis=2),
                                 jnp.repeat(valid_b[:, :, None], H, axis=2)],
                                axis=2)                                            # (B,T,2H)

        in_specs = [
            _per_sentence_spec((L * T, 2 * Cd)),   # x_pair
            _per_sentence_spec((L * T, 1)),        # char validity mask
            _per_sentence_spec((T, Wd)),           # word embeddings
            _per_sentence_spec((T, Hd)),           # word validity mask (per direction)
            _replicated_spec(self.c_wih.shape),
            _replicated_spec(self.c_whh.shape),
            _replicated_spec(self.c_b.shape),
            _replicated_spec(self.w_wih.shape),
            _replicated_spec(self.w_whh.shape),
            _replicated_spec(self.w_b.shape),
            _replicated_spec(self.wp_all.shape),
            _replicated_spec(self.bp_all.shape),
        ]
        out_specs = (_per_sentence_spec((T, P_pad)), _per_sentence_spec((T, P_pad)))
        out_shape = (jax.ShapeDtypeStruct((B, T, P_pad), jnp.float32),
                     jax.ShapeDtypeStruct((B, T, P_pad), jnp.float32))

        out1, out2 = pl.pallas_call(
            functools.partial(ctb_tagger_kernel, H=H, T=T, max_len=L, P_pad=P_pad),
            grid=(B,),
            out_shape=out_shape,
            in_specs=in_specs,
            out_specs=out_specs,
            compiler_params=pltpu.CompilerParams(dimension_semantics=("parallel",)),
        )(x_pair, cmask, word_emb, wmask,
          self.c_wih, self.c_whh, self.c_b,
          self.w_wih, self.w_whh, self.w_b,
          self.wp_all, self.bp_all)

        return out1[:, :T0, :self.P1], out2[:, :T0, :self.P2]

    def __call__(self, text_word_seq, text_char_ids, char_lens, sent_lens):
        return self._jit_forward(text_word_seq, text_char_ids, char_lens, sent_lens)


# TODO(synk): _max_only_output (scatter_-based one-hot) is never called in the
# reference forward(), so it is intentionally not ported.


if __name__ == "__main__":
    key = jax.random.PRNGKey(0)
    k_param, k_word, k_char = jax.random.split(key, 3)

    char_embedding_dim = 8
    word_embedding_dim = 16
    hidden_dim = 32
    char_size = 50
    word_size = 40
    tagset_size_pos = 7
    tagset_size_pos2 = 5

    batch = 2           # sentences per pallas_call (grid axis, "parallel")
    num_words = 6       # words per (longest) sentence; padded to 8 internally
    max_char_len = 5    # padded chars per word

    model = CTBTaggerPallas(char_embedding_dim, word_embedding_dim, hidden_dim,
                            char_size, word_size, tagset_size_pos,
                            tagset_size_pos2, k_param)

    text_word_seq = jax.random.randint(k_word, (batch, num_words), 0, word_size, jnp.int32)
    text_char_ids = jax.random.randint(k_char, (batch, num_words, max_char_len), 0,
                                       char_size, jnp.int32)
    char_lens = jnp.array([[3, 5, 2, 4, 5, 1],
                           [2, 3, 4, 1, 0, 0]], jnp.int32)   # 0 on padded word slots
    sent_lens = jnp.array([6, 4], jnp.int32)                 # variable sentence lengths

    scores_pos, scores_pos2 = model(text_word_seq, text_char_ids, char_lens, sent_lens)
    jax.block_until_ready((scores_pos, scores_pos2))

    assert scores_pos.shape == (batch, num_words, tagset_size_pos)
    assert scores_pos2.shape == (batch, num_words, tagset_size_pos2)
    assert bool(jnp.all(jnp.isfinite(scores_pos)))
    assert bool(jnp.all(jnp.isfinite(scores_pos2)))
    # rows of log_softmax must normalize to 1 in prob space
    assert bool(jnp.allclose(jnp.exp(scores_pos).sum(axis=2), 1.0, atol=1e-3))
    assert bool(jnp.allclose(jnp.exp(scores_pos2).sum(axis=2), 1.0, atol=1e-3))
    print("KERNEL_OK")
</pallas_src>

<mosaic_0001>
module attributes {stable_mosaic.version = 11 : i64} {
  func.func @ctb_tagger_kernel(%arg0: i32, %arg1: memref<1x40x16xbf16, #tpu.memory_space<vmem>>, %arg2: memref<1x40x1xf32, #tpu.memory_space<vmem>>, %arg3: memref<1x8x16xbf16, #tpu.memory_space<vmem>>, %arg4: memref<1x8x32xf32, #tpu.memory_space<vmem>>, %arg5: memref<16x128xbf16, #tpu.memory_space<vmem>>, %arg6: memref<32x128xbf16, #tpu.memory_space<vmem>>, %arg7: memref<1x128xf32, #tpu.memory_space<vmem>>, %arg8: memref<96x128xbf16, #tpu.memory_space<vmem>>, %arg9: memref<32x128xbf16, #tpu.memory_space<vmem>>, %arg10: memref<1x128xf32, #tpu.memory_space<vmem>>, %arg11: memref<32x256xbf16, #tpu.memory_space<vmem>>, %arg12: memref<1x256xf32, #tpu.memory_space<vmem>>, %arg13: memref<1x8x128xf32, #tpu.memory_space<vmem>>, %arg14: memref<1x8x128xf32, #tpu.memory_space<vmem>>) attributes {dimension_semantics = [#tpu.dimension_semantics<parallel>], iteration_bounds = array<i64: 2>, scalar_prefetch = 0 : i64, scratch_operands = 0 : i64, tpu.core_type = #tpu.core_type<tc>, window_params = [{transform_indices = @transform_0, window_bounds = array<i64: 1, 40, 16>}, {transform_indices = @transform_1, window_bounds = array<i64: 1, 40, 1>}, {transform_indices = @transform_2, window_bounds = array<i64: 1, 8, 16>}, {transform_indices = @transform_3, window_bounds = array<i64: 1, 8, 32>}, {pipeline_mode = #tpu.pipeline_mode<synchronous>, transform_indices = @transform_4, window_bounds = array<i64: 16, 128>}, {pipeline_mode = #tpu.pipeline_mode<synchronous>, transform_indices = @transform_5, window_bounds = array<i64: 32, 128>}, {pipeline_mode = #tpu.pipeline_mode<synchronous>, transform_indices = @transform_6, window_bounds = array<i64: 1, 128>}, {pipeline_mode = #tpu.pipeline_mode<synchronous>, transform_indices = @transform_7, window_bounds = array<i64: 96, 128>}, {pipeline_mode = #tpu.pipeline_mode<synchronous>, transform_indices = @transform_8, window_bounds = array<i64: 32, 128>}, {pipeline_mode = #tpu.pipeline_mode<synchronous>, transform_indices = @transform_9, window_bounds = array<i64: 1, 128>}, {pipeline_mode = #tpu.pipeline_mode<synchronous>, transform_indices = @transform_10, window_bounds = array<i64: 32, 256>}, {pipeline_mode = #tpu.pipeline_mode<synchronous>, transform_indices = @transform_11, window_bounds = array<i64: 1, 256>}, {transform_indices = @transform_12, window_bounds = array<i64: 1, 8, 128>}, {transform_indices = @transform_13, window_bounds = array<i64: 1, 8, 128>}]} {
    %c0 = arith.constant 0 : index
    %c0_0 = arith.constant 0 : index
    %c0_1 = arith.constant 0 : index
    %0 = vector.load %arg1[%c0, %c0_0, %c0_1] : memref<1x40x16xbf16, #tpu.memory_space<vmem>>, vector<1x40x16xbf16>
    %1 = vector.shape_cast %0 : vector<1x40x16xbf16> to vector<40x16xbf16>
    %c0_2 = arith.constant 0 : index
    %c0_3 = arith.constant 0 : index
    %2 = vector.load %arg5[%c0_2, %c0_3] : memref<16x128xbf16, #tpu.memory_space<vmem>>, vector<16x128xbf16>
    %cst = arith.constant dense<0.000000e+00> : vector<40x128xf32>
    %3 = tpu.matmul %1, %2, %cst {dimension_numbers = #tpu.dot_dimension_numbers<[1], [0], [0], [1], [0, 0, 1, 1], [], []>} : vector<40x16xbf16>, vector<16x128xbf16>, vector<40x128xf32> -> vector<40x128xf32>
    %c0_4 = arith.constant 0 : index
    %c0_5 = arith.constant 0 : index
    %4 = vector.load %arg7[%c0_4, %c0_5] : memref<1x128xf32, #tpu.memory_space<vmem>>, vector<1x128xf32>
    %5 = vector.broadcast %4 : vector<1x128xf32> to vector<40x128xf32>
    %6 = arith.addf %3, %5 : vector<40x128xf32>
    %c0_6 = arith.constant 0 : index
    %c0_7 = arith.constant 0 : index
    %7 = vector.load %arg6[%c0_6, %c0_7] : memref<32x128xbf16, #tpu.memory_space<vmem>>, vector<32x128xbf16>
    %c0_8 = arith.constant 0 : index
    %c0_9 = arith.constant 0 : index
    %c0_10 = arith.constant 0 : index
    %8 = vector.load %arg2[%c0_8, %c0_9, %c0_10] : memref<1x40x1xf32, #tpu.memory_space<vmem>>, vector<1x40x1xf32>
    %9 = vector.shape_cast %8 : vector<1x40x1xf32> to vector<40x1xf32>
    %cst_11 = arith.constant 0.000000e+00 : f32
    %10 = vector.broadcast %cst_11 : f32 to vector<40x1xf32>
    %11 = arith.cmpf one, %9, %10 : vector<40x1xf32>
    %cst_12 = arith.constant 0.000000e+00 : f32
    %12 = vector.broadcast %cst_12 : f32 to vector<8x32xf32>
    %cst_13 = arith.constant 0.000000e+00 : f32
    %13 = vector.broadcast %cst_13 : f32 to vector<8x32xf32>
    %14 = vector.extract_strided_slice %6 {offsets = [0, 0], sizes = [8, 128], strides = [1, 1]} : vector<40x128xf32> to vector<8x128xf32>
    %15 = arith.truncf %12 : vector<8x32xf32> to vector<8x32xbf16>
    %cst_14 = arith.constant dense<0.000000e+00> : vector<8x128xf32>
    %16 = tpu.matmul %15, %7, %cst_14 {dimension_numbers = #tpu.dot_dimension_numbers<[1], [0], [0], [1], [0, 0, 1, 1], [], []>} : vector<8x32xbf16>, vector<32x128xbf16>, vector<8x128xf32> -> vector<8x128xf32>
    %17 = arith.addf %14, %16 : vector<8x128xf32>
    %18 = arith.negf %17 : vector<8x128xf32>
    %19 = math.exp %18 : vector<8x128xf32>
    %cst_15 = arith.constant 1.000000e+00 : f32
    %20 = vector.broadcast %cst_15 : f32 to vector<8x128xf32>
    %21 = arith.addf %20, %19 : vector<8x128xf32>
    %22 = arith.divf %20, %21 : vector<8x128xf32>
    %23 = vector.extract_strided_slice %17 {offsets = [0, 64], sizes = [8, 32], strides = [1, 1]} : vector<8x128xf32> to vector<8x32xf32>
    %24 = math.tanh %23 : vector<8x32xf32>
    %25 = vector.extract_strided_slice %22 {offsets = [0, 32], sizes = [8, 32], strides = [1, 1]} : vector<8x128xf32> to vector<8x32xf32>
    %26 = arith.mulf %25, %13 : vector<8x32xf32>
    %27 = vector.extract_strided_slice %22 {offsets = [0, 0], sizes = [8, 32], strides = [1, 1]} : vector<8x128xf32> to vector<8x32xf32>
    %28 = arith.mulf %27, %24 : vector<8x32xf32>
    %29 = arith.addf %26, %28 : vector<8x32xf32>
    %30 = vector.extract_strided_slice %22 {offsets = [0, 96], sizes = [8, 32], strides = [1, 1]} : vector<8x128xf32> to vector<8x32xf32>
    %31 = math.tanh %29 : vector<8x32xf32>
    %32 = arith.mulf %30, %31 : vector<8x32xf32>
    %33 = vector.extract_strided_slice %11 {offsets = [0, 0], sizes = [8, 1], strides = [1, 1]} : vector<40x1xi1> to vector<8x1xi1>
    %34 = vector.shape_cast %33 : vector<8x1xi1> to vector<8x1xi1>
    %35 = vector.broadcast %34 : vector<8x1xi1> to vector<8x32xi1>
    %36 = arith.select %35, %32, %12 : vector<8x32xi1>, vector<8x32xf32>
    %37 = vector.shape_cast %33 : vector<8x1xi1> to vector<8x1xi1>
    %38 = vector.broadcast %37 : vector<8x1xi1> to vector<8x32xi1>
    %39 = arith.select %38, %29, %13 : vector<8x32xi1>, vector<8x32xf32>
    %40 = vector.extract_strided_slice %6 {offsets = [8, 0], sizes = [8, 128], strides = [1, 1]} : vector<40x128xf32> to vector<8x128xf32>
    %41 = arith.truncf %36 : vector<8x32xf32> to vector<8x32xbf16>
    %cst_16 = arith.constant dense<0.000000e+00> : vector<8x128xf32>
    %42 = tpu.matmul %41, %7, %cst_16 {dimension_numbers = #tpu.dot_dimension_numbers<[1], [0], [0], [1], [0, 0, 1, 1], [], []>} : vector<8x32xbf16>, vector<32x128xbf16>, vector<8x128xf32> -> vector<8x128xf32>
    %43 = arith.addf %40, %42 : vector<8x128xf32>
    %44 = arith.negf %43 : vector<8x128xf32>
    %45 = math.exp %44 : vector<8x128xf32>
    %cst_17 = arith.constant 1.000000e+00 : f32
    %46 = vector.broadcast %cst_17 : f32 to vector<8x128xf32>
    %47 = arith.addf %46, %45 : vector<8x128xf32>
    %48 = arith.divf %46, %47 : vector<8x128xf32>
    %49 = vector.extract_strided_slice %43 {offsets = [0, 64], sizes = [8, 32], strides = [1, 1]} : vector<8x128xf32> to vector<8x32xf32>
    %50 = math.tanh %49 : vector<8x32xf32>
    %51 = vector.extract_strided_slice %48 {offsets = [0, 32], sizes = [8, 32], strides = [1, 1]} : vector<8x128xf32> to vector<8x32xf32>
    %52 = arith.mulf %51, %39 : vector<8x32xf32>
    %53 = vector.extract_strided_slice %48 {offsets = [0, 0], sizes = [8, 32], strides = [1, 1]} : vector<8x128xf32> to vector<8x32xf32>
    %54 = arith.mulf %53, %50 : vector<8x32xf32>
    %55 = arith.addf %52, %54 : vector<8x32xf32>
    %56 = vector.extract_strided_slice %48 {offsets = [0, 96], sizes = [8, 32], strides = [1, 1]} : vector<8x128xf32> to vector<8x32xf32>
    %57 = math.tanh %55 : vector<8x32xf32>
    %58 = arith.mulf %56, %57 : vector<8x32xf32>
    %59 = vector.extract_strided_slice %11 {offsets = [8, 0], sizes = [8, 1], strides = [1, 1]} : vector<40x1xi1> to vector<8x1xi1>
    %60 = vector.shape_cast %59 : vector<8x1xi1> to vector<8x1xi1>
    %61 = vector.broadcast %60 : vector<8x1xi1> to vector<8x32xi1>
    %62 = arith.select %61, %58, %36 : vector<8x32xi1>, vector<8x32xf32>
    %63 = vector.shape_cast %59 : vector<8x1xi1> to vector<8x1xi1>
    %64 = vector.broadcast %63 : vector<8x1xi1> to vector<8x32xi1>
    %65 = arith.select %64, %55, %39 : vector<8x32xi1>, vector<8x32xf32>
    %66 = vector.extract_strided_slice %6 {offsets = [16, 0], sizes = [8, 128], strides = [1, 1]} : vector<40x128xf32> to vector<8x128xf32>
    %67 = arith.truncf %62 : vector<8x32xf32> to vector<8x32xbf16>
    %cst_18 = arith.constant dense<0.000000e+00> : vector<8x128xf32>
    %68 = tpu.matmul %67, %7, %cst_18 {dimension_numbers = #tpu.dot_dimension_numbers<[1], [0], [0], [1], [0, 0, 1, 1], [], []>} : vector<8x32xbf16>, vector<32x128xbf16>, vector<8x128xf32> -> vector<8x128xf32>
    %69 = arith.addf %66, %68 : vector<8x128xf32>
    %70 = arith.negf %69 : vector<8x128xf32>
    %71 = math.exp %70 : vector<8x128xf32>
    %cst_19 = arith.constant 1.000000e+00 : f32
    %72 = vector.broadcast %cst_19 : f32 to vector<8x128xf32>
    %73 = arith.addf %72, %71 : vector<8x128xf32>
    %74 = arith.divf %72, %73 : vector<8x128xf32>
    %75 = vector.extract_strided_slice %69 {offsets = [0, 64], sizes = [8, 32], strides = [1, 1]} : vector<8x128xf32> to vector<8x32xf32>
    %76 = math.tanh %75 : vector<8x32xf32>
    %77 = vector.extract_strided_slice %74 {offsets = [0, 32], sizes = [8, 32], strides = [1, 1]} : vector<8x128xf32> to vector<8x32xf32>
    %78 = arith.mulf %77, %65 : vector<8x32xf32>
    %79 = vector.extract_strided_slice %74 {offsets = [0, 0], sizes = [8, 32], strides = [1, 1]} : vector<8x128xf32> to vector<8x32xf32>
    %80 = arith.mulf %79, %76 : vector<8x32xf32>
    %81 = arith.addf %78, %80 : vector<8x32xf32>
    %82 = vector.extract_strided_slice %74 {offsets = [0, 96], sizes = [8, 32], strides = [1, 1]} : vector<8x128xf32> to vector<8x32xf32>
    %83 = math.tanh %81 : vector<8x32xf32>
    %84 = arith.mulf %82, %83 : vector<8x32xf32>
    %85 = vector.extract_strided_slice %11 {offsets = [16, 0], sizes = [8, 1], strides = [1, 1]} : vector<40x1xi1> to vector<8x1xi1>
    %86 = vector.shape_cast %85 : vector<8x1xi1> to vector<8x1xi1>
    %87 = vector.broadcast %86 : vector<8x1xi1> to vector<8x32xi1>
    %88 = arith.select %87, %84, %62 : vector<8x32xi1>, vector<8x32xf32>
    %89 = vector.shape_cast %85 : vector<8x1xi1> to vector<8x1xi1>
    %90 = vector.broadcast %89 : vector<8x1xi1> to vector<8x32xi1>
    %91 = arith.select %90, %81, %65 : vector<8x32xi1>, vector<8x32xf32>
    %92 = vector.extract_strided_slice %6 {offsets = [24, 0], sizes = [8, 128], strides = [1, 1]} : vector<40x128xf32> to vector<8x128xf32>
    %93 = arith.truncf %88 : vector<8x32xf32> to vector<8x32xbf16>
    %cst_20 = arith.constant dense<0.000000e+00> : vector<8x128xf32>
    %94 = tpu.matmul %93, %7, %cst_20 {dimension_numbers = #tpu.dot_dimension_numbers<[1], [0], [0], [1], [0, 0, 1, 1], [], []>} : vector<8x32xbf16>, vector<32x128xbf16>, vector<8x128xf32> -> vector<8x128xf32>
    %95 = arith.addf %92, %94 : vector<8x128xf32>
    %96 = arith.negf %95 : vector<8x128xf32>
    %97 = math.exp %96 : vector<8x128xf32>
    %cst_21 = arith.constant 1.000000e+00 : f32
    %98 = vector.broadcast %cst_21 : f32 to vector<8x128xf32>
    %99 = arith.addf %98, %97 : vector<8x128xf32>
    %100 = arith.divf %98, %99 : vector<8x128xf32>
    %101 = vector.extract_strided_slice %95 {offsets = [0, 64], sizes = [8, 32], strides = [1, 1]} : vector<8x128xf32> to vector<8x32xf32>
    %102 = math.tanh %101 : vector<8x32xf32>
    %103 = vector.extract_strided_slice %100 {offsets = [0, 32], sizes = [8, 32], strides = [1, 1]} : vector<8x128xf32> to vector<8x32xf32>
    %104 = arith.mulf %103, %91 : vector<8x32xf32>
    %105 = vector.extract_strided_slice %100 {offsets = [0, 0], sizes = [8, 32], strides = [1, 1]} : vector<8x128xf32> to vector<8x32xf32>
    %106 = arith.mulf %105, %102 : vector<8x32xf32>
    %107 = arith.addf %104, %106 : vector<8x32xf32>
    %108 = vector.extract_strided_slice %100 {offsets = [0, 96], sizes = [8, 32], strides = [1, 1]} : vector<8x128xf32> to vector<8x32xf32>
    %109 = math.tanh %107 : vector<8x32xf32>
    %110 = arith.mulf %108, %109 : vector<8x32xf32>
    %111 = vector.extract_strided_slice %11 {offsets = [24, 0], sizes = [8, 1], strides = [1, 1]} : vector<40x1xi1> to vector<8x1xi1>
    %112 = vector.shape_cast %111 : vector<8x1xi1> to vector<8x1xi1>
    %113 = vector.broadcast %112 : vector<8x1xi1> to vector<8x32xi1>
    %114 = arith.select %113, %110, %88 : vector<8x32xi1>, vector<8x32xf32>
    %115 = vector.shape_cast %111 : vector<8x1xi1> to vector<8x1xi1>
    %116 = vector.broadcast %115 : vector<8x1xi1> to vector<8x32xi1>
    %117 = arith.select %116, %107, %91 : vector<8x32xi1>, vector<8x32xf32>
    %118 = vector.extract_strided_slice %6 {offsets = [32, 0], sizes = [8, 128], strides = [1, 1]} : vector<40x128xf32> to vector<8x128xf32>
    %119 = arith.truncf %114 : vector<8x32xf32> to vector<8x32xbf16>
    %cst_22 = arith.constant dense<0.000000e+00> : vector<8x128xf32>
    %120 = tpu.matmul %119, %7, %cst_22 {dimension_numbers = #tpu.dot_dimension_numbers<[1], [0], [0], [1], [0, 0, 1, 1], [], []>} : vector<8x32xbf16>, vector<32x128xbf16>, vector<8x128xf32> -> vector<8x128xf32>
    %121 = arith.addf %118, %120 : vector<8x128xf32>
    %122 = arith.negf %121 : vector<8x128xf32>
    %123 = math.exp %122 : vector<8x128xf32>
    %cst_23 = arith.constant 1.000000e+00 : f32
    %124 = vector.broadcast %cst_23 : f32 to vector<8x128xf32>
    %125 = arith.addf %124, %123 : vector<8x128xf32>
    %126 = arith.divf %124, %125 : vector<8x128xf32>
    %127 = vector.extract_strided_slice %121 {offsets = [0, 64], sizes = [8, 32], strides = [1, 1]} : vector<8x128xf32> to vector<8x32xf32>
    %128 = math.tanh %127 : vector<8x32xf32>
    %129 = vector.extract_strided_slice %126 {offsets = [0, 32], sizes = [8, 32], strides = [1, 1]} : vector<8x128xf32> to vector<8x32xf32>
    %130 = arith.mulf %129, %117 : vector<8x32xf32>
    %131 = vector.extract_strided_slice %126 {offsets = [0, 0], sizes = [8, 32], strides = [1, 1]} : vector<8x128xf32> to vector<8x32xf32>
    %132 = arith.mulf %131, %128 : vector<8x32xf32>
    %133 = arith.addf %130, %132 : vector<8x32xf32>
    %134 = vector.extract_strided_slice %126 {offsets = [0, 96], sizes = [8, 32], strides = [1, 1]} : vector<8x128xf32> to vector<8x32xf32>
    %135 = math.tanh %133 : vector<8x32xf32>
    %136 = arith.mulf %134, %135 : vector<8x32xf32>
    %137 = vector.extract_strided_slice %11 {offsets = [32, 0], sizes = [8, 1], strides = [1, 1]} : vector<40x1xi1> to vector<8x1xi1>
    %138 = vector.shape_cast %137 : vector<8x1xi1> to vector<8x1xi1>
    %139 = vector.broadcast %138 : vector<8x1xi1> to vector<8x32xi1>
    %140 = arith.select %139, %136, %114 : vector<8x32xi1>, vector<8x32xf32>
    %c0_24 = arith.constant 0 : index
    %c0_25 = arith.constant 0 : index
    %c0_26 = arith.constant 0 : index
    %141 = vector.load %arg3[%c0_24, %c0_25, %c0_26] : memref<1x8x16xbf16, #tpu.memory_space<vmem>>, vector<1x8x16xbf16>
    %142 = vector.shape_cast %141 : vector<1x8x16xbf16> to vector<8x16xbf16>
    %143 = arith.truncf %140 : vector<8x32xf32> to vector<8x32xbf16>
    %144 = tpu.concatenate %142, %143 in 1 : vector<8x16xbf16>, vector<8x32xbf16> -> vector<8x48xbf16>
    %145 = tpu.iota {dimensions = array<i32: 0>} : vector<8x8xi32>
    %146 = tpu.iota {dimensions = array<i32: 1>} : vector<8x8xi32>
    %147 = arith.addi %145, %146 : vector<8x8xi32>
    %c7_i32 = arith.constant 7 : i32
    %148 = vector.broadcast %c7_i32 : i32 to vector<8x8xi32>
    %149 = arith.cmpi eq, %147, %148 : vector<8x8xi32>
    %150 = arith.extui %149 : vector<8x8xi1> to vector<8x8xi32>
    %151 = arith.sitofp %150 : vector<8x8xi32> to vector<8x8xf32>
    %152 = arith.truncf %151 : vector<8x8xf32> to vector<8x8xbf16>
    %cst_27 = arith.constant dense<0.000000e+00> : vector<8x48xf32>
    %153 = tpu.matmul %152, %144, %cst_27 {dimension_numbers = #tpu.dot_dimension_numbers<[1], [0], [0], [1], [0, 0, 1, 1], [], []>} : vector<8x8xbf16>, vector<8x48xbf16>, vector<8x48xf32> -> vector<8x48xf32>
    %154 = arith.truncf %153 : vector<8x48xf32> to vector<8x48xbf16>
    %155 = tpu.concatenate %144, %154 in 1 : vector<8x48xbf16>, vector<8x48xbf16> -> vector<8x96xbf16>
    %c0_28 = arith.constant 0 : index
    %c0_29 = arith.constant 0 : index
    %156 = vector.load %arg8[%c0_28, %c0_29] : memref<96x128xbf16, #tpu.memory_space<vmem>>, vector<96x128xbf16>
    %cst_30 = arith.constant dense<0.000000e+00> : vector<8x128xf32>
    %157 = tpu.matmul %155, %156, %cst_30 {dimension_numbers = #tpu.dot_dimension_numbers<[1], [0], [0], [1], [0, 0, 1, 1], [], []>} : vector<8x96xbf16>, vector<96x128xbf16>, vector<8x128xf32> -> vector<8x128xf32>
    %c0_31 = arith.constant 0 : index
    %c0_32 = arith.constant 0 : index
    %158 = vector.load %arg10[%c0_31, %c0_32] : memref<1x128xf32, #tpu.memory_space<vmem>>, vector<1x128xf32>
    %159 = vector.broadcast %158 : vector<1x128xf32> to vector<8x128xf32>
    %160 = arith.addf %157, %159 : vector<8x128xf32>
    %c0_33 = arith.constant 0 : index
    %c0_34 = arith.constant 0 : index
    %161 = vector.load %arg9[%c0_33, %c0_34] : memref<32x128xbf16, #tpu.memory_space<vmem>>, vector<32x128xbf16>
    %c0_35 = arith.constant 0 : index
    %c0_36 = arith.constant 0 : index
    %c0_37 = arith.constant 0 : index
    %162 = vector.load %arg4[%c0_35, %c0_36, %c0_37] : memref<1x8x32xf32, #tpu.memory_space<vmem>>, vector<1x8x32xf32>
    %163 = vector.shape_cast %162 : vector<1x8x32xf32> to vector<8x32xf32>
    %cst_38 = arith.constant 0.000000e+00 : f32
    %164 = vector.broadcast %cst_38 : f32 to vector<8x32xf32>
    %165 = arith.cmpf one, %163, %164 : vector<8x32xf32>
    %cst_39 = arith.constant 0.000000e+00 : f32
    %166 = vector.broadcast %cst_39 : f32 to vector<1x32xf32>
    %cst_40 = arith.constant 0.000000e+00 : f32
    %167 = vector.broadcast %cst_40 : f32 to vector<1x32xf32>
    %168 = vector.extract_strided_slice %160 {offsets = [0, 0], sizes = [1, 128], strides = [1, 1]} : vector<8x128xf32> to vector<1x128xf32>
    %169 = arith.truncf %166 : vector<1x32xf32> to vector<1x32xbf16>
    %cst_41 = arith.constant dense<0.000000e+00> : vector<1x128xf32>
    %170 = tpu.matmul %169, %161, %cst_41 {dimension_numbers = #tpu.dot_dimension_numbers<[1], [0], [0], [1], [0, 0, 1, 1], [], []>} : vector<1x32xbf16>, vector<32x128xbf16>, vector<1x128xf32> -> vector<1x128xf32>
    %171 = arith.addf %168, %170 : vector<1x128xf32>
    %172 = arith.negf %171 : vector<1x128xf32>
    %173 = math.exp %172 : vector<1x128xf32>
    %cst_42 = arith.constant 1.000000e+00 : f32
    %174 = vector.broadcast %cst_42 : f32 to vector<1x128xf32>
    %175 = arith.addf %174, %173 : vector<1x128xf32>
    %176 = arith.divf %174, %175 : vector<1x128xf32>
    %177 = vector.extract_strided_slice %171 {offsets = [0, 64], sizes = [1, 32], strides = [1, 1]} : vector<1x128xf32> to vector<1x32xf32>
    %178 = math.tanh %177 : vector<1x32xf32>
    %179 = vector.extract_strided_slice %176 {offsets = [0, 32], sizes = [1, 32], strides = [1, 1]} : vector<1x128xf32> to vector<1x32xf32>
    %180 = arith.mulf %179, %167 : vector<1x32xf32>
    %181 = vector.extract_strided_slice %176 {offsets = [0, 0], sizes = [1, 32], strides = [1, 1]} : vector<1x128xf32> to vector<1x32xf32>
    %182 = arith.mulf %181, %178 : vector<1x32xf32>
    %183 = arith.addf %180, %182 : vector<1x32xf32>
    %184 = vector.extract_strided_slice %176 {offsets = [0, 96], sizes = [1, 32], strides = [1, 1]} : vector<1x128xf32> to vector<1x32xf32>
    %185 = math.tanh %183 : vector<1x32xf32>
    %186 = arith.mulf %184, %185 : vector<1x32xf32>
    %187 = vector.extract_strided_slice %165 {offsets = [0, 0], sizes = [1, 32], strides = [1, 1]} : vector<8x32xi1> to vector<1x32xi1>
    %188 = arith.select %187, %186, %166 : vector<1x32xi1>, vector<1x32xf32>
    %189 = arith.select %187, %183, %167 : vector<1x32xi1>, vector<1x32xf32>
    %190 = vector.extract_strided_slice %188 {offsets = [0, 0], sizes = [1, 16], strides = [1, 1]} : vector<1x32xf32> to vector<1x16xf32>
    %191 = vector.extract_strided_slice %188 {offsets = [0, 16], sizes = [1, 16], strides = [1, 1]} : vector<1x32xf32> to vector<1x16xf32>
    %192 = vector.extract_strided_slice %160 {offsets = [1, 0], sizes = [1, 128], strides = [1, 1]} : vector<8x128xf32> to vector<1x128xf32>
    %193 = arith.truncf %188 : vector<1x32xf32> to vector<1x32xbf16>
    %cst_43 = arith.constant dense<0.000000e+00> : vector<1x128xf32>
    %194 = tpu.matmul %193, %161, %cst_43 {dimension_numbers = #tpu.dot_dimension_numbers<[1], [0], [0], [1], [0, 0, 1, 1], [], []>} : vector<1x32xbf16>, vector<32x128xbf16>, vector<1x128xf32> -> vector<1x128xf32>
    %195 = arith.addf %192, %194 : vector<1x128xf32>
    %196 = arith.negf %195 : vector<1x128xf32>
    %197 = math.exp %196 : vector<1x128xf32>
    %cst_44 = arith.constant 1.000000e+00 : f32
    %198 = vector.broadcast %cst_44 : f32 to vector<1x128xf32>
    %199 = arith.addf %198, %197 : vector<1x128xf32>
    %200 = arith.divf %198, %199 : vector<1x128xf32>
    %201 = vector.extract_strided_slice %195 {offsets = [0, 64], sizes = [1, 32], strides = [1, 1]} : vector<1x128xf32> to vector<1x32xf32>
    %202 = math.tanh %201 : vector<1x32xf32>
    %203 = vector.extract_strided_slice %200 {offsets = [0, 32], sizes = [1, 32], strides = [1, 1]} : vector<1x128xf32> to vector<1x32xf32>
    %204 = arith.mulf %203, %189 : vector<1x32xf32>
    %205 = vector.extract_strided_slice %200 {offsets = [0, 0], sizes = [1, 32], strides = [1, 1]} : vector<1x128xf32> to vector<1x32xf32>
    %206 = arith.mulf %205, %202 : vector<1x32xf32>
    %207 = arith.addf %204, %206 : vector<1x32xf32>
    %208 = vector.extract_strided_slice %200 {offsets = [0, 96], sizes = [1, 32], strides = [1, 1]} : vector<1x128xf32> to vector<1x32xf32>
    %209 = math.tanh %207 : vector<1x32xf32>
    %210 = arith.mulf %208, %209 : vector<1x32xf32>
    %211 = vector.extract_strided_slice %165 {offsets = [1, 0], sizes = [1, 32], strides = [1, 1]} : vector<8x32xi1> to vector<1x32xi1>
    %212 = arith.select %211, %210, %188 : vector<1x32xi1>, vector<1x32xf32>
    %213 = arith.select %211, %207, %189 : vector<1x32xi1>, vector<1x32xf32>
    %214 = vector.extract_strided_slice %212 {offsets = [0, 0], sizes = [1, 16], strides = [1, 1]} : vector<1x32xf32> to vector<1x16xf32>
    %215 = vector.extract_strided_slice %212 {offsets = [0, 16], sizes = [1, 16], strides = [1, 1]} : vector<1x32xf32> to vector<1x16xf32>
    %216 = vector.extract_strided_slice %160 {offsets = [2, 0], sizes = [1, 128], strides = [1, 1]} : vector<8x128xf32> to vector<1x128xf32>
    %217 = arith.truncf %212 : vector<1x32xf32> to vector<1x32xbf16>
    %cst_45 = arith.constant dense<0.000000e+00> : vector<1x128xf32>
    %218 = tpu.matmul %217, %161, %cst_45 {dimension_numbers = #tpu.dot_dimension_numbers<[1], [0], [0], [1], [0, 0, 1, 1], [], []>} : vector<1x32xbf16>, vector<32x128xbf16>, vector<1x128xf32> -> vector<1x128xf32>
    %219 = arith.addf %216, %218 : vector<1x128xf32>
    %220 = arith.negf %219 : vector<1x128xf32>
    %221 = math.exp %220 : vector<1x128xf32>
    %cst_46 = arith.constant 1.000000e+00 : f32
    %222 = vector.broadcast %cst_46 : f32 to vector<1x128xf32>
    %223 = arith.addf %222, %221 : vector<1x128xf32>
    %224 = arith.divf %222, %223 : vector<1x128xf32>
    %225 = vector.extract_strided_slice %219 {offsets = [0, 64], sizes = [1, 32], strides = [1, 1]} : vector<1x128xf32> to vector<1x32xf32>
    %226 = math.tanh %225 : vector<1x32xf32>
    %227 = vector.extract_strided_slice %224 {offsets = [0, 32], sizes = [1, 32], strides = [1, 1]} : vector<1x128xf32> to vector<1x32xf32>
    %228 = arith.mulf %227, %213 : vector<1x32xf32>
    %229 = vector.extract_strided_slice %224 {offsets = [0, 0], sizes = [1, 32], strides = [1, 1]} : vector<1x128xf32> to vector<1x32xf32>
    %230 = arith.mulf %229, %226 : vector<1x32xf32>
    %231 = arith.addf %228, %230 : vector<1x32xf32>
    %232 = vector.extract_strided_slice %224 {offsets = [0, 96], sizes = [1, 32], strides = [1, 1]} : vector<1x128xf32> to vector<1x32xf32>
    %233 = math.tanh %231 : vector<1x32xf32>
    %234 = arith.mulf %232, %233 : vector<1x32xf32>
    %235 = vector.extract_strided_slice %165 {offsets = [2, 0], sizes = [1, 32], strides = [1, 1]} : vector<8x32xi1> to vector<1x32xi1>
    %236 = arith.select %235, %234, %212 : vector<1x32xi1>, vector<1x32xf32>
    %237 = arith.select %235, %231, %213 : vector<1x32xi1>, vector<1x32xf32>
    %238 = vector.extract_strided_slice %236 {offsets = [0, 0], sizes = [1, 16], strides = [1, 1]} : vector<1x32xf32> to vector<1x16xf32>
    %239 = vector.extract_strided_slice %236 {offsets = [0, 16], sizes = [1, 16], strides = [1, 1]} : vector<1x32xf32> to vector<1x16xf32>
    %240 = vector.extract_strided_slice %160 {offsets = [3, 0], sizes = [1, 128], strides = [1, 1]} : vector<8x128xf32> to vector<1x128xf32>
    %241 = arith.truncf %236 : vector<1x32xf32> to vector<1x32xbf16>
    %cst_47 = arith.constant dense<0.000000e+00> : vector<1x128xf32>
    %242 = tpu.matmul %241, %161, %cst_47 {dimension_numbers = #tpu.dot_dimension_numbers<[1], [0], [0], [1], [0, 0, 1, 1], [], []>} : vector<1x32xbf16>, vector<32x128xbf16>, vector<1x128xf32> -> vector<1x128xf32>
    %243 = arith.addf %240, %242 : vector<1x128xf32>
    %244 = arith.negf %243 : vector<1x128xf32>
    %245 = math.exp %244 : vector<1x128xf32>
    %cst_48 = arith.constant 1.000000e+00 : f32
    %246 = vector.broadcast %cst_48 : f32 to vector<1x128xf32>
    %247 = arith.addf %246, %245 : vector<1x128xf32>
    %248 = arith.divf %246, %247 : vector<1x128xf32>
    %249 = vector.extract_strided_slice %243 {offsets = [0, 64], sizes = [1, 32], strides = [1, 1]} : vector<1x128xf32> to vector<1x32xf32>
    %250 = math.tanh %249 : vector<1x32xf32>
    %251 = vector.extract_strided_slice %248 {offsets = [0, 32], sizes = [1, 32], strides = [1, 1]} : vector<1x128xf32> to vector<1x32xf32>
    %252 = arith.mulf %251, %237 : vector<1x32xf32>
    %253 = vector.extract_strided_slice %248 {offsets = [0, 0], sizes = [1, 32], strides = [1, 1]} : vector<1x128xf32> to vector<1x32xf32>
    %254 = arith.mulf %253, %250 : vector<1x32xf32>
    %255 = arith.addf %252, %254 : vector<1x32xf32>
    %256 = vector.extract_strided_slice %248 {offsets = [0, 96], sizes = [1, 32], strides = [1, 1]} : vector<1x128xf32> to vector<1x32xf32>
    %257 = math.tanh %255 : vector<1x32xf32>
    %258 = arith.mulf %256, %257 : vector<1x32xf32>
    %259 = vector.extract_strided_slice %165 {offsets = [3, 0], sizes = [1, 32], strides = [1, 1]} : vector<8x32xi1> to vector<1x32xi1>
    %260 = arith.select %259, %258, %236 : vector<1x32xi1>, vector<1x32xf32>
    %261 = arith.select %259, %255, %237 : vector<1x32xi1>, vector<1x32xf32>
    %262 = vector.extract_strided_slice %260 {offsets = [0, 0], sizes = [1, 16], strides = [1, 1]} : vector<1x32xf32> to vector<1x16xf32>
    %263 = vector.extract_strided_slice %260 {offsets = [0, 16], sizes = [1, 16], strides = [1, 1]} : vector<1x32xf32> to vector<1x16xf32>
    %264 = vector.extract_strided_slice %160 {offsets = [4, 0], sizes = [1, 128], strides = [1, 1]} : vector<8x128xf32> to vector<1x128xf32>
    %265 = arith.truncf %260 : vector<1x32xf32> to vector<1x32xbf16>
    %cst_49 = arith.constant dense<0.000000e+00> : vector<1x128xf32>
    %266 = tpu.matmul %265, %161, %cst_49 {dimension_numbers = #tpu.dot_dimension_numbers<[1], [0], [0], [1], [0, 0, 1, 1], [], []>} : vector<1x32xbf16>, vector<32x128xbf16>, vector<1x128xf32> -> vector<1x128xf32>
    %267 = arith.addf %264, %266 : vector<1x128xf32>
    %268 = arith.negf %267 : vector<1x128xf32>
    %269 = math.exp %268 : vector<1x128xf32>
    %cst_50 = arith.constant 1.000000e+00 : f32
    %270 = vector.broadcast %cst_50 : f32 to vector<1x128xf32>
    %271 = arith.addf %270, %269 : vector<1x128xf32>
    %272 = arith.divf %270, %271 : vector<1x128xf32>
    %273 = vector.extract_strided_slice %267 {offsets = [0, 64], sizes = [1, 32], strides = [1, 1]} : vector<1x128xf32> to vector<1x32xf32>
    %274 = math.tanh %273 : vector<1x32xf32>
    %275 = vector.extract_strided_slice %272 {offsets = [0, 32], sizes = [1, 32], strides = [1, 1]} : vector<1x128xf32> to vector<1x32xf32>
    %276 = arith.mulf %275, %261 : vector<1x32xf32>
    %277 = vector.extract_strided_slice %272 {offsets = [0, 0], sizes = [1, 32], strides = [1, 1]} : vector<1x128xf32> to vector<1x32xf32>
    %278 = arith.mulf %277, %274 : vector<1x32xf32>
    %279 = arith.addf %276, %278 : vector<1x32xf32>
    %280 = vector.extract_strided_slice %272 {offsets = [0, 96], sizes = [1, 32], strides = [1, 1]} : vector<1x128xf32> to vector<1x32xf32>
    %281 = math.tanh %279 : vector<1x32xf32>
    %282 = arith.mulf %280, %281 : vector<1x32xf32>
    %283 = vector.extract_strided_slice %165 {offsets = [4, 0], sizes = [1, 32], strides = [1, 1]} : vector<8x32xi1> to vector<1x32xi1>
    %284 = arith.select %283, %282, %260 : vector<1x32xi1>, vector<1x32xf32>
    %285 = arith.select %283, %279, %261 : vector<1x32xi1>, vector<1x32xf32>
    %286 = vector.extract_strided_slice %284 {offsets = [0, 0], sizes = [1, 16], strides = [1, 1]} : vector<1x32xf32> to vector<1x16xf32>
    %287 = vector.extract_strided_slice %284 {offsets = [0, 16], sizes = [1, 16], strides = [1, 1]} : vector<1x32xf32> to vector<1x16xf32>
    %288 = vector.extract_strided_slice %160 {offsets = [5, 0], sizes = [1, 128], strides = [1, 1]} : vector<8x128xf32> to vector<1x128xf32>
    %289 = arith.truncf %284 : vector<1x32xf32> to vector<1x32xbf16>
    %cst_51 = arith.constant dense<0.000000e+00> : vector<1x128xf32>
    %290 = tpu.matmul %289, %161, %cst_51 {dimension_numbers = #tpu.dot_dimension_numbers<[1], [0], [0], [1], [0, 0, 1, 1], [], []>} : vector<1x32xbf16>, vector<32x128xbf16>, vector<1x128xf32> -> vector<1x128xf32>
    %291 = arith.addf %288, %290 : vector<1x128xf32>
    %292 = arith.negf %291 : vector<1x128xf32>
    %293 = math.exp %292 : vector<1x128xf32>
    %cst_52 = arith.constant 1.000000e+00 : f32
    %294 = vector.broadcast %cst_52 : f32 to vector<1x128xf32>
    %295 = arith.addf %294, %293 : vector<1x128xf32>
    %296 = arith.divf %294, %295 : vector<1x128xf32>
    %297 = vector.extract_strided_slice %291 {offsets = [0, 64], sizes = [1, 32], strides = [1, 1]} : vector<1x128xf32> to vector<1x32xf32>
    %298 = math.tanh %297 : vector<1x32xf32>
    %299 = vector.extract_strided_slice %296 {offsets = [0, 32], sizes = [1, 32], strides = [1, 1]} : vector<1x128xf32> to vector<1x32xf32>
    %300 = arith.mulf %299, %285 : vector<1x32xf32>
    %301 = vector.extract_strided_slice %296 {offsets = [0, 0], sizes = [1, 32], strides = [1, 1]} : vector<1x128xf32> to vector<1x32xf32>
    %302 = arith.mulf %301, %298 : vector<1x32xf32>
    %303 = arith.addf %300, %302 : vector<1x32xf32>
    %304 = vector.extract_strided_slice %296 {offsets = [0, 96], sizes = [1, 32], strides = [1, 1]} : vector<1x128xf32> to vector<1x32xf32>
    %305 = math.tanh %303 : vector<1x32xf32>
    %306 = arith.mulf %304, %305 : vector<1x32xf32>
    %307 = vector.extract_strided_slice %165 {offsets = [5, 0], sizes = [1, 32], strides = [1, 1]} : vector<8x32xi1> to vector<1x32xi1>
    %308 = arith.select %307, %306, %284 : vector<1x32xi1>, vector<1x32xf32>
    %309 = arith.select %307, %303, %285 : vector<1x32xi1>, vector<1x32xf32>
    %310 = vector.extract_strided_slice %308 {offsets = [0, 0], sizes = [1, 16], strides = [1, 1]} : vector<1x32xf32> to vector<1x16xf32>
    %311 = vector.extract_strided_slice %308 {offsets = [0, 16], sizes = [1, 16], strides = [1, 1]} : vector<1x32xf32> to vector<1x16xf32>
    %312 = vector.extract_strided_slice %160 {offsets = [6, 0], sizes = [1, 128], strides = [1, 1]} : vector<8x128xf32> to vector<1x128xf32>
    %313 = arith.truncf %308 : vector<1x32xf32> to vector<1x32xbf16>
    %cst_53 = arith.constant dense<0.000000e+00> : vector<1x128xf32>
    %314 = tpu.matmul %313, %161, %cst_53 {dimension_numbers = #tpu.dot_dimension_numbers<[1], [0], [0], [1], [0, 0, 1, 1], [], []>} : vector<1x32xbf16>, vector<32x128xbf16>, vector<1x128xf32> -> vector<1x128xf32>
    %315 = arith.addf %312, %314 : vector<1x128xf32>
    %316 = arith.negf %315 : vector<1x128xf32>
    %317 = math.exp %316 : vector<1x128xf32>
    %cst_54 = arith.constant 1.000000e+00 : f32
    %318 = vector.broadcast %cst_54 : f32 to vector<1x128xf32>
    %319 = arith.addf %318, %317 : vector<1x128xf32>
    %320 = arith.divf %318, %319 : vector<1x128xf32>
    %321 = vector.extract_strided_slice %315 {offsets = [0, 64], sizes = [1, 32], strides = [1, 1]} : vector<1x128xf32> to vector<1x32xf32>
    %322 = math.tanh %321 : vector<1x32xf32>
    %323 = vector.extract_strided_slice %320 {offsets = [0, 32], sizes = [1, 32], strides = [1, 1]} : vector<1x128xf32> to vector<1x32xf32>
    %324 = arith.mulf %323, %309 : vector<1x32xf32>
    %325 = vector.extract_strided_slice %320 {offsets = [0, 0], sizes = [1, 32], strides = [1, 1]} : vector<1x128xf32> to vector<1x32xf32>
    %326 = arith.mulf %325, %322 : vector<1x32xf32>
    %327 = arith.addf %324, %326 : vector<1x32xf32>
    %328 = vector.extract_strided_slice %320 {offsets = [0, 96], sizes = [1, 32], strides = [1, 1]} : vector<1x128xf32> to vector<1x32xf32>
    %329 = math.tanh %327 : vector<1x32xf32>
    %330 = arith.mulf %328, %329 : vector<1x32xf32>
    %331 = vector.extract_strided_slice %165 {offsets = [6, 0], sizes = [1, 32], strides = [1, 1]} : vector<8x32xi1> to vector<1x32xi1>
    %332 = arith.select %331, %330, %308 : vector<1x32xi1>, vector<1x32xf32>
    %333 = arith.select %331, %327, %309 : vector<1x32xi1>, vector<1x32xf32>
    %334 = vector.extract_strided_slice %332 {offsets = [0, 0], sizes = [1, 16], strides = [1, 1]} : vector<1x32xf32> to vector<1x16xf32>
    %335 = vector.extract_strided_slice %332 {offsets = [0, 16], sizes = [1, 16], strides = [1, 1]} : vector<1x32xf32> to vector<1x16xf32>
    %336 = vector.extract_strided_slice %160 {offsets = [7, 0], sizes = [1, 128], strides = [1, 1]} : vector<8x128xf32> to vector<1x128xf32>
    %337 = arith.truncf %332 : vector<1x32xf32> to vector<1x32xbf16>
    %cst_55 = arith.constant dense<0.000000e+00> : vector<1x128xf32>
    %338 = tpu.matmul %337, %161, %cst_55 {dimension_numbers = #tpu.dot_dimension_numbers<[1], [0], [0], [1], [0, 0, 1, 1], [], []>} : vector<1x32xbf16>, vector<32x128xbf16>, vector<1x128xf32> -> vector<1x128xf32>
    %339 = arith.addf %336, %338 : vector<1x128xf32>
    %340 = arith.negf %339 : vector<1x128xf32>
    %341 = math.exp %340 : vector<1x128xf32>
    %cst_56 = arith.constant 1.000000e+00 : f32
    %342 = vector.broadcast %cst_56 : f32 to vector<1x128xf32>
    %343 = arith.addf %342, %341 : vector<1x128xf32>
    %344 = arith.divf %342, %343 : vector<1x128xf32>
    %345 = vector.extract_strided_slice %339 {offsets = [0, 64], sizes = [1, 32], strides = [1, 1]} : vector<1x128xf32> to vector<1x32xf32>
    %346 = math.tanh %345 : vector<1x32xf32>
    %347 = vector.extract_strided_slice %344 {offsets = [0, 32], sizes = [1, 32], strides = [1, 1]} : vector<1x128xf32> to vector<1x32xf32>
    %348 = arith.mulf %347, %333 : vector<1x32xf32>
    %349 = vector.extract_strided_slice %344 {offsets = [0, 0], sizes = [1, 32], strides = [1, 1]} : vector<1x128xf32> to vector<1x32xf32>
    %350 = arith.mulf %349, %346 : vector<1x32xf32>
    %351 = arith.addf %348, %350 : vector<1x32xf32>
    %352 = vector.extract_strided_slice %344 {offsets = [0, 96], sizes = [1, 32], strides = [1, 1]} : vector<1x128xf32> to vector<1x32xf32>
    %353 = math.tanh %351 : vector<1x32xf32>
    %354 = arith.mulf %352, %353 : vector<1x32xf32>
    %355 = vector.extract_strided_slice %165 {offsets = [7, 0], sizes = [1, 32], strides = [1, 1]} : vector<8x32xi1> to vector<1x32xi1>
    %356 = arith.select %355, %354, %332 : vector<1x32xi1>, vector<1x32xf32>
    %357 = vector.extract_strided_slice %356 {offsets = [0, 0], sizes = [1, 16], strides = [1, 1]} : vector<1x32xf32> to vector<1x16xf32>
    %358 = vector.extract_strided_slice %356 {offsets = [0, 16], sizes = [1, 16], strides = [1, 1]} : vector<1x32xf32> to vector<1x16xf32>
    %359 = tpu.concatenate %190, %214, %238, %262, %286, %310, %334, %357 in 0 : vector<1x16xf32>, vector<1x16xf32>, vector<1x16xf32>, vector<1x16xf32>, vector<1x16xf32>, vector<1x16xf32>, vector<1x16xf32>, vector<1x16xf32> -> vector<8x16xf32>
    %360 = tpu.concatenate %358, %335, %311, %287, %263, %239, %215, %191 in 0 : vector<1x16xf32>, vector<1x16xf32>, vector<1x16xf32>, vector<1x16xf32>, vector<1x16xf32>, vector<1x16xf32>, vector<1x16xf32>, vector<1x16xf32> -> vector<8x16xf32>
    %361 = tpu.concatenate %359, %360 in 1 : vector<8x16xf32>, vector<8x16xf32> -> vector<8x32xf32>
    %362 = arith.truncf %361 : vector<8x32xf32> to vector<8x32xbf16>
    %c0_57 = arith.constant 0 : index
    %c0_58 = arith.constant 0 : index
    %363 = vector.load %arg11[%c0_57, %c0_58] : memref<32x256xbf16, #tpu.memory_space<vmem>>, vector<32x256xbf16>
    %cst_59 = arith.constant dense<0.000000e+00> : vector<8x256xf32>
    %364 = tpu.matmul %362, %363, %cst_59 {dimension_numbers = #tpu.dot_dimension_numbers<[1], [0], [0], [1], [0, 0, 1, 1], [], []>} : vector<8x32xbf16>, vector<32x256xbf16>, vector<8x256xf32> -> vector<8x256xf32>
    %c0_60 = arith.constant 0 : index
    %c0_61 = arith.constant 0 : index
    %365 = vector.load %arg12[%c0_60, %c0_61] : memref<1x256xf32, #tpu.memory_space<vmem>>, vector<1x256xf32>
    %366 = vector.broadcast %365 : vector<1x256xf32> to vector<8x256xf32>
    %367 = arith.addf %364, %366 : vector<8x256xf32>
    %368 = vector.extract_strided_slice %367 {offsets = [0, 0], sizes = [8, 128], strides = [1, 1]} : vector<8x256xf32> to vector<8x128xf32>
    %cst_62 = arith.constant dense<0xFF800000> : vector<8xf32>
    %369 = vector.multi_reduction <maximumf>, %368, %cst_62 [1] : vector<8x128xf32> to vector<8xf32>
    %370 = vector.shape_cast %369 : vector<8xf32> to vector<8x1xf32>
    %371 = vector.broadcast %370 : vector<8x1xf32> to vector<8x128xf32>
    %372 = arith.subf %368, %371 : vector<8x128xf32>
    %373 = math.exp %372 : vector<8x128xf32>
    %cst_63 = arith.constant dense<0.000000e+00> : vector<8xf32>
    %374 = vector.multi_reduction <add>, %373, %cst_63 [1] : vector<8x128xf32> to vector<8xf32>
    %375 = vector.shape_cast %374 : vector<8xf32> to vector<8x1xf32>
    %376 = math.log %375 : vector<8x1xf32>
    %377 = vector.broadcast %376 : vector<8x1xf32> to vector<8x128xf32>
    %378 = arith.subf %372, %377 : vector<8x128xf32>
    %c0_64 = arith.constant 0 : index
    %c0_65 = arith.constant 0 : index
    %c0_66 = arith.constant 0 : index
    %379 = vector.load %arg13[%c0_64, %c0_65, %c0_66] : memref<1x8x128xf32, #tpu.memory_space<vmem>>, vector<1x8x128xf32>
    %380 = vector.shape_cast %379 : vector<1x8x128xf32> to vector<8x128xf32>
    %381 = vector.shape_cast %378 : vector<8x128xf32> to vector<1x8x128xf32>
    tpu.vector_store %arg13[%c0_64, %c0_65, %c0_66], %381 {strides = array<i32>} : memref<1x8x128xf32, #tpu.memory_space<vmem>>, vector<1x8x128xf32>,
    %382 = vector.extract_strided_slice %367 {offsets = [0, 128], sizes = [8, 128], strides = [1, 1]} : vector<8x256xf32> to vector<8x128xf32>
    %cst_67 = arith.constant dense<0xFF800000> : vector<8xf32>
    %383 = vector.multi_reduction <maximumf>, %382, %cst_67 [1] : vector<8x128xf32> to vector<8xf32>
    %384 = vector.shape_cast %383 : vector<8xf32> to vector<8x1xf32>
    %385 = vector.broadcast %384 : vector<8x1xf32> to vector<8x128xf32>
    %386 = arith.subf %382, %385 : vector<8x128xf32>
    %387 = math.exp %386 : vector<8x128xf32>
    %cst_68 = arith.constant dense<0.000000e+00> : vector<8xf32>
    %388 = vector.multi_reduction <add>, %387, %cst_68 [1] : vector<8x128xf32> to vector<8xf32>
    %389 = vector.shape_cast %388 : vector<8xf32> to vector<8x1xf32>
    %390 = math.log %389 : vector<8x1xf32>
    %391 = vector.broadcast %390 : vector<8x1xf32> to vector<8x128xf32>
    %392 = arith.subf %386, %391 : vector<8x128xf32>
    %c0_69 = arith.constant 0 : index
    %c0_70 = arith.constant 0 : index
    %c0_71 = arith.constant 0 : index
    %393 = vector.load %arg14[%c0_69, %c0_70, %c0_71] : memref<1x8x128xf32, #tpu.memory_space<vmem>>, vector<1x8x128xf32>
    %394 = vector.shape_cast %393 : vector<1x8x128xf32> to vector<8x128xf32>
    %395 = vector.shape_cast %392 : vector<8x128xf32> to vector<1x8x128xf32>
    tpu.vector_store %arg14[%c0_69, %c0_70, %c0_71], %395 {strides = array<i32>} : memref<1x8x128xf32, #tpu.memory_space<vmem>>, vector<1x8x128xf32>,
    return
  }
  func.func @transform_0(%arg0: i32) -> (i32, i32, i32) {
    %c0_i32 = arith.constant 0 : i32
    %c0_i32_0 = arith.constant 0 : i32
    %c0_i32_1 = arith.constant 0 : i32
    return %arg0, %c0_i32, %c0_i32_0 : i32, i32, i32
  }
  func.func @transform_1(%arg0: i32) -> (i32, i32, i32) {
    %c0_i32 = arith.constant 0 : i32
    %c0_i32_0 = arith.constant 0 : i32
    %c0_i32_1 = arith.constant 0 : i32
    return %arg0, %c0_i32, %c0_i32_0 : i32, i32, i32
  }
  func.func @transform_2(%arg0: i32) -> (i32, i32, i32) {
    %c0_i32 = arith.constant 0 : i32
    %c0_i32_0 = arith.constant 0 : i32
    %c0_i32_1 = arith.constant 0 : i32
    return %arg0, %c0_i32, %c0_i32_0 : i32, i32, i32
  }
  func.func @transform_3(%arg0: i32) -> (i32, i32, i32) {
    %c0_i32 = arith.constant 0 : i32
    %c0_i32_0 = arith.constant 0 : i32
    %c0_i32_1 = arith.constant 0 : i32
    return %arg0, %c0_i32, %c0_i32_0 : i32, i32, i32
  }
  func.func @transform_4(%arg0: i32) -> (i32, i32) {
    %c0_i32 = arith.constant 0 : i32
    %c0_i32_0 = arith.constant 0 : i32
    %c0_i32_1 = arith.constant 0 : i32
    return %c0_i32, %c0_i32_0 : i32, i32
  }
  func.func @transform_5(%arg0: i32) -> (i32, i32) {
    %c0_i32 = arith.constant 0 : i32
    %c0_i32_0 = arith.constant 0 : i32
    %c0_i32_1 = arith.constant 0 : i32
    return %c0_i32, %c0_i32_0 : i32, i32
  }
  func.func @transform_6(%arg0: i32) -> (i32, i32) {
    %c0_i32 = arith.constant 0 : i32
    %c0_i32_0 = arith.constant 0 : i32
    %c0_i32_1 = arith.constant 0 : i32
    return %c0_i32, %c0_i32_0 : i32, i32
  }
  func.func @transform_7(%arg0: i32) -> (i32, i32) {
    %c0_i32 = arith.constant 0 : i32
    %c0_i32_0 = arith.constant 0 : i32
    %c0_i32_1 = arith.constant 0 : i32
    return %c0_i32, %c0_i32_0 : i32, i32
  }
  func.func @transform_8(%arg0: i32) -> (i32, i32) {
    %c0_i32 = arith.constant 0 : i32
    %c0_i32_0 = arith.constant 0 : i32
    %c0_i32_1 = arith.constant 0 : i32
    return %c0_i32, %c0_i32_0 : i32, i32
  }
  func.func @transform_9(%arg0: i32) -> (i32, i32) {
    %c0_i32 = arith.constant 0 : i32
    %c0_i32_0 = arith.constant 0 : i32
    %c0_i32_1 = arith.constant 0 : i32
    return %c0_i32, %c0_i32_0 : i32, i32
  }
  func.func @transform_10(%arg0: i32) -> (i32, i32) {
    %c0_i32 = arith.constant 0 : i32
    %c0_i32_0 = arith.constant 0 : i32
    %c0_i32_1 = arith.constant 0 : i32
    return %c0_i32, %c0_i32_0 : i32, i32
  }
  func.func @transform_11(%arg0: i32) -> (i32, i32) {
    %c0_i32 = arith.constant 0 : i32
    %c0_i32_0 = arith.constant 0 : i32
    %c0_i32_1 = arith.constant 0 : i32
    return %c0_i32, %c0_i32_0 : i32, i32
  }
  func.func @transform_12(%arg0: i32) -> (i32, i32, i32) {
    %c0_i32 = arith.constant 0 : i32
    %c0_i32_0 = arith.constant 0 : i32
    %c0_i32_1 = arith.constant 0 : i32
    return %arg0, %c0_i32, %c0_i32_0 : i32, i32, i32
  }
  func.func @transform_13(%arg0: i32) -> (i32, i32, i32) {
    %c0_i32 = arith.constant 0 : i32
    %c0_i32_0 = arith.constant 0 : i32
    %c0_i32_1 = arith.constant 0 : i32
    return %arg0, %c0_i32, %c0_i32_0 : i32, i32, i32
  }
}

</mosaic_0001>

<llo_original>
// kernel: _forward.1
$region0: #{_forward.1}
  #allocation0 [shape = 'u32[]', space=smem, size = 0x4, offset = 0x4, fixed_abs, tag = 'smem constant byte address 0x4 - core index']
  #allocation1 [shape = 'u32[72,128]{1,0:T(1,128)}', space=vmem, size = 0x9000, scoped, tag = 'internal scratch']
  %s0 = inlined_call_operand.vmem [shape: bf16[2,40,16], index: 0, kind: input, shape index: {}]
  %s1 = inlined_call_operand.vmem [shape: f32[2,40,1], index: 1, kind: input, shape index: {}]
  %s2 = inlined_call_operand.vmem [shape: bf16[2,8,16], index: 2, kind: input, shape index: {}]
  %s3 = inlined_call_operand.vmem [shape: f32[2,8,32], index: 3, kind: input, shape index: {}]
  %s4 = inlined_call_operand.vmem [shape: bf16[16,128], index: 4, kind: input, shape index: {}]
  %s5 = inlined_call_operand.vmem [shape: bf16[32,128], index: 5, kind: input, shape index: {}]
  %s6 = inlined_call_operand.vmem [shape: f32[1,128], index: 6, kind: input, shape index: {}]
  %s7 = inlined_call_operand.vmem [shape: bf16[96,128], index: 7, kind: input, shape index: {}]
  %s8 = inlined_call_operand.vmem [shape: bf16[32,128], index: 8, kind: input, shape index: {}]
  %s9 = inlined_call_operand.vmem [shape: f32[1,128], index: 9, kind: input, shape index: {}]
  %s10 = inlined_call_operand.vmem [shape: bf16[32,256], index: 10, kind: input, shape index: {}]
  %s11 = inlined_call_operand.vmem [shape: f32[1,256], index: 11, kind: input, shape index: {}]
  %s12 = inlined_call_operand.vmem [shape: f32[2,8,128], index: 12, kind: output, shape index: {0}]
  %s13 = inlined_call_operand.vmem [shape: f32[2,8,128], index: 13, kind: output, shape index: {1}]
  %14 = xla_tuple %s12, %s13
  %s15 = sld [smem:[#allocation0]]
  $region89: #{_forward.1} parent=0
    _
  %s17 = ssub.s32 1, %s15
  %s18 = scalar_select 0, %s17, %s15
  loop: start=0, step=1, limit=4
  $region2: #{_forward.1} parent=0 // loop_pre_header
    _
  $region3: #{_forward.1} parent=0 // loop_header
    %s20 = sphi 0, %s24
    %p21 = scmp.ge.s32.totalorder %s20, 4
    %s30 = sphi 0, %s32
    %s33 = sphi 0, %s30
    %s34 = sphi 0, %s33
    %s50 = sphi 0, %s34
    %s56 = sphi 0, %s58
    %s59 = sphi 0, %s56
    %s60 = sphi 0, %s59
    %s76 = sphi 0, %s60
    %s82 = sphi 0, %s84
    %s85 = sphi 0, %s82
    %s86 = sphi 0, %s85
    %s102 = sphi 0, %s86
    %s108 = sphi 0, %s110
    %s111 = sphi 0, %s108
    %s112 = sphi 0, %s111
    %s128 = sphi 0, %s112
    %s132 = sphi 0, %s132
    %s134 = sphi 0, %s132
    %s135 = sphi 0, %s134
    %s149 = sphi 0, %s135
    %s153 = sphi 0, %s153
    %s155 = sphi 0, %s153
    %s156 = sphi 0, %s155
    %s170 = sphi 0, %s156
    %s174 = sphi 0, %s174
    %s176 = sphi 0, %s174
    %s177 = sphi 0, %s176
    %s191 = sphi 0, %s177
    %s195 = sphi 0, %s195
    %s197 = sphi 0, %s195
    %s198 = sphi 0, %s197
    %s212 = sphi 0, %s198
    %s216 = sphi 0, %s216
    %s218 = sphi 0, %s216
    %s219 = sphi 0, %s218
    %s233 = sphi 0, %s219
    %s237 = sphi 0, %s237
    %s239 = sphi 0, %s237
    %s240 = sphi 0, %s239
    %s254 = sphi 0, %s240
    %s258 = sphi 0, %s258
    %s260 = sphi 0, %s258
    %s261 = sphi 0, %s260
    %s275 = sphi 0, %s261
    %s279 = sphi 0, %s279
    %s281 = sphi 0, %s279
    %s282 = sphi 0, %s281
    %s296 = sphi 0, %s282
    %s302 = sphi 0, %s304
    %s305 = sphi 0, %s302
    %s306 = sphi 0, %s305
    %s322 = sphi 0, %s306
    %s328 = sphi 0, %s330
    %s331 = sphi 0, %s328
    %s332 = sphi 0, %s331
    %s348 = sphi 0, %s332
  $region4: #{_forward.1} parent=0 // loop_header_branch
    %23 = sbr.rel (%p21) target = $region8
  $region5: #{_forward.1} parent=0 // loop_body
    %s25 = ssub.s32 %s20, 1
    %s26 = ssub.s32 %s20, 2
    %s27 = sadd.s32 %s20, 1
    %s28 = ssub.s32 %s20, %s27
    %p29 = scmp.eq.s32.totalorder %s28, 0
    %s31 = sadd.s32 %s30, 1
    %s32 = scalar_select %p29, %s30, %s31
    %p35 = pneg %p29
    %p36 = scmp.eq.s32.totalorder %s20, 1
    %p37 = por %p35, %p36
    %p38 = scmp.ne.s32.totalorder %s30, %s33
    %p39 = scmp.eq.s32.totalorder %s20, 0
    %p40 = por %p38, %p39
    %p41 = scmp.ne.s32.totalorder %s30, %s33
    %p42 = scmp.eq.s32.totalorder %s25, 1
    %p43 = por %p41, %p42
    %p44 = scmp.ne.s32.totalorder %s33, %s34
    %p45 = scmp.eq.s32.totalorder %s25, 0
    %p46 = por %p44, %p45
    %p47 = scmp.ne.s32.totalorder %s33, %s34
    %p48 = scmp.eq.s32.totalorder %s26, 1
    %p49 = por %p47, %p48
    %p51 = scmp.ne.s32.totalorder %s34, %s50
    %p52 = scmp.eq.s32.totalorder %s26, 0
    %p53 = por %p51, %p52
    %s54 = ssub.s32 %s20, %s27
    %p55 = scmp.eq.s32.totalorder %s54, 0
    %s57 = sadd.s32 %s56, 1
    %s58 = scalar_select %p55, %s56, %s57
    %p61 = pneg %p55
    %p62 = scmp.eq.s32.totalorder %s20, 1
    %p63 = por %p61, %p62
    %p64 = scmp.ne.s32.totalorder %s56, %s59
    %p65 = scmp.eq.s32.totalorder %s20, 0
    %p66 = por %p64, %p65
    %p67 = scmp.ne.s32.totalorder %s56, %s59
    %p68 = scmp.eq.s32.totalorder %s25, 1
    %p69 = por %p67, %p68
    %p70 = scmp.ne.s32.totalorder %s59, %s60
    %p71 = scmp.eq.s32.totalorder %s25, 0
    %p72 = por %p70, %p71
    %p73 = scmp.ne.s32.totalorder %s59, %s60
    %p74 = scmp.eq.s32.totalorder %s26, 1
    %p75 = por %p73, %p74
    %p77 = scmp.ne.s32.totalorder %s60, %s76
    %p78 = scmp.eq.s32.totalorder %s26, 0
    %p79 = por %p77, %p78
    %s80 = ssub.s32 %s20, %s27
    %p81 = scmp.eq.s32.totalorder %s80, 0
    %s83 = sadd.s32 %s82, 1
    %s84 = scalar_select %p81, %s82, %s83
    %p87 = pneg %p81
    %p88 = scmp.eq.s32.totalorder %s20, 1
    %p89 = por %p87, %p88
    %p90 = scmp.ne.s32.totalorder %s82, %s85
    %p91 = scmp.eq.s32.totalorder %s20, 0
    %p92 = por %p90, %p91
    %p93 = scmp.ne.s32.totalorder %s82, %s85
    %p94 = scmp.eq.s32.totalorder %s25, 1
    %p95 = por %p93, %p94
    %p96 = scmp.ne.s32.totalorder %s85, %s86
    %p97 = scmp.eq.s32.totalorder %s25, 0
    %p98 = por %p96, %p97
    %p99 = scmp.ne.s32.totalorder %s85, %s86
    %p100 = scmp.eq.s32.totalorder %s26, 1
    %p101 = por %p99, %p100
    %p103 = scmp.ne.s32.totalorder %s86, %s102
    %p104 = scmp.eq.s32.totalorder %s26, 0
    %p105 = por %p103, %p104
    %s106 = ssub.s32 %s20, %s27
    %p107 = scmp.eq.s32.totalorder %s106, 0
    %s109 = sadd.s32 %s108, 1
    %s110 = scalar_select %p107, %s108, %s109
    %p113 = pneg %p107
    %p114 = scmp.eq.s32.totalorder %s20, 1
    %p115 = por %p113, %p114
    %p116 = scmp.ne.s32.totalorder %s108, %s111
    %p117 = scmp.eq.s32.totalorder %s20, 0
    %p118 = por %p116, %p117
    %p119 = scmp.ne.s32.totalorder %s108, %s111
    %p120 = scmp.eq.s32.totalorder %s25, 1
    %p121 = por %p119, %p120
    %p122 = scmp.ne.s32.totalorder %s111, %s112
    %p123 = scmp.eq.s32.totalorder %s25, 0
    %p124 = por %p122, %p123
    %p125 = scmp.ne.s32.totalorder %s111, %s112
    %p126 = scmp.eq.s32.totalorder %s26, 1
    %p127 = por %p125, %p126
    %p129 = scmp.ne.s32.totalorder %s112, %s128
    %p130 = scmp.eq.s32.totalorder %s26, 0
    %p131 = por %p129, %p130
    %s133 = sadd.s32 %s132, 1
    %p136 = scmp.eq.s32.totalorder %s20, 1
    %p137 = scmp.ne.s32.totalorder %s132, %s134
    %p138 = scmp.eq.s32.totalorder %s20, 0
    %p139 = por %p137, %p138
    %p140 = scmp.ne.s32.totalorder %s132, %s134
    %p141 = scmp.eq.s32.totalorder %s25, 1
    %p142 = por %p140, %p141
    %p143 = scmp.ne.s32.totalorder %s134, %s135
    %p144 = scmp.eq.s32.totalorder %s25, 0
    %p145 = por %p143, %p144
    %p146 = scmp.ne.s32.totalorder %s134, %s135
    %p147 = scmp.eq.s32.totalorder %s26, 1
    %p148 = por %p146, %p147
    %p150 = scmp.ne.s32.totalorder %s135, %s149
    %p151 = scmp.eq.s32.totalorder %s26, 0
    %p152 = por %p150, %p151
    %s154 = sadd.s32 %s153, 1
    %p157 = scmp.eq.s32.totalorder %s20, 1
    %p158 = scmp.ne.s32.totalorder %s153, %s155
    %p159 = scmp.eq.s32.totalorder %s20, 0
    %p160 = por %p158, %p159
    %p161 = scmp.ne.s32.totalorder %s153, %s155
    %p162 = scmp.eq.s32.totalorder %s25, 1
    %p163 = por %p161, %p162
    %p164 = scmp.ne.s32.totalorder %s155, %s156
    %p165 = scmp.eq.s32.totalorder %s25, 0
    %p166 = por %p164, %p165
    %p167 = scmp.ne.s32.totalorder %s155, %s156
    %p168 = scmp.eq.s32.totalorder %s26, 1
    %p169 = por %p167, %p168
    %p171 = scmp.ne.s32.totalorder %s156, %s170
    %p172 = scmp.eq.s32.totalorder %s26, 0
    %p173 = por %p171, %p172
    %s175 = sadd.s32 %s174, 1
    %p178 = scmp.eq.s32.totalorder %s20, 1
    %p179 = scmp.ne.s32.totalorder %s174, %s176
    %p180 = scmp.eq.s32.totalorder %s20, 0
    %p181 = por %p179, %p180
    %p182 = scmp.ne.s32.totalorder %s174, %s176
    %p183 = scmp.eq.s32.totalorder %s25, 1
    %p184 = por %p182, %p183
    %p185 = scmp.ne.s32.totalorder %s176, %s177
    %p186 = scmp.eq.s32.totalorder %s25, 0
    %p187 = por %p185, %p186
    %p188 = scmp.ne.s32.totalorder %s176, %s177
    %p189 = scmp.eq.s32.totalorder %s26, 1
    %p190 = por %p188, %p189
    %p192 = scmp.ne.s32.totalorder %s177, %s191
    %p193 = scmp.eq.s32.totalorder %s26, 0
    %p194 = por %p192, %p193
    %s196 = sadd.s32 %s195, 1
    %p199 = scmp.eq.s32.totalorder %s20, 1
    %p200 = scmp.ne.s32.totalorder %s195, %s197
    %p201 = scmp.eq.s32.totalorder %s20, 0
    %p202 = por %p200, %p201
    %p203 = scmp.ne.s32.totalorder %s195, %s197
    %p204 = scmp.eq.s32.totalorder %s25, 1
    %p205 = por %p203, %p204
    %p206 = scmp.ne.s32.totalorder %s197, %s198
    %p207 = scmp.eq.s32.totalorder %s25, 0
    %p208 = por %p206, %p207
    %p209 = scmp.ne.s32.totalorder %s197, %s198
    %p210 = scmp.eq.s32.totalorder %s26, 1
    %p211 = por %p209, %p210
    %p213 = scmp.ne.s32.totalorder %s198, %s212
    %p214 = scmp.eq.s32.totalorder %s26, 0
    %p215 = por %p213, %p214
    %s217 = sadd.s32 %s216, 1
    %p220 = scmp.eq.s32.totalorder %s20, 1
    %p221 = scmp.ne.s32.totalorder %s216, %s218
    %p222 = scmp.eq.s32.totalorder %s20, 0
    %p223 = por %p221, %p222
    %p224 = scmp.ne.s32.totalorder %s216, %s218
    %p225 = scmp.eq.s32.totalorder %s25, 1
    %p226 = por %p224, %p225
    %p227 = scmp.ne.s32.totalorder %s218, %s219
    %p228 = scmp.eq.s32.totalorder %s25, 0
    %p229 = por %p227, %p228
    %p230 = scmp.ne.s32.totalorder %s218, %s219
    %p231 = scmp.eq.s32.totalorder %s26, 1
    %p232 = por %p230, %p231
    %p234 = scmp.ne.s32.totalorder %s219, %s233
    %p235 = scmp.eq.s32.totalorder %s26, 0
    %p236 = por %p234, %p235
    %s238 = sadd.s32 %s237, 1
    %p241 = scmp.eq.s32.totalorder %s20, 1
    %p242 = scmp.ne.s32.totalorder %s237, %s239
    %p243 = scmp.eq.s32.totalorder %s20, 0
    %p244 = por %p242, %p243
    %p245 = scmp.ne.s32.totalorder %s237, %s239
    %p246 = scmp.eq.s32.totalorder %s25, 1
    %p247 = por %p245, %p246
    %p248 = scmp.ne.s32.totalorder %s239, %s240
    %p249 = scmp.eq.s32.totalorder %s25, 0
    %p250 = por %p248, %p249
    %p251 = scmp.ne.s32.totalorder %s239, %s240
    %p252 = scmp.eq.s32.totalorder %s26, 1
    %p253 = por %p251, %p252
    %p255 = scmp.ne.s32.totalorder %s240, %s254
    %p256 = scmp.eq.s32.totalorder %s26, 0
    %p257 = por %p255, %p256
    %s259 = sadd.s32 %s258, 1
    %p262 = scmp.eq.s32.totalorder %s20, 1
    %p263 = scmp.ne.s32.totalorder %s258, %s260
    %p264 = scmp.eq.s32.totalorder %s20, 0
    %p265 = por %p263, %p264
    %p266 = scmp.ne.s32.totalorder %s258, %s260
    %p267 = scmp.eq.s32.totalorder %s25, 1
    %p268 = por %p266, %p267
    %p269 = scmp.ne.s32.totalorder %s260, %s261
    %p270 = scmp.eq.s32.totalorder %s25, 0
    %p271 = por %p269, %p270
    %p272 = scmp.ne.s32.totalorder %s260, %s261
    %p273 = scmp.eq.s32.totalorder %s26, 1
    %p274 = por %p272, %p273
    %p276 = scmp.ne.s32.totalorder %s261, %s275
    %p277 = scmp.eq.s32.totalorder %s26, 0
    %p278 = por %p276, %p277
    %s280 = sadd.s32 %s279, 1
    %p283 = scmp.eq.s32.totalorder %s20, 1
    %p284 = scmp.ne.s32.totalorder %s279, %s281
    %p285 = scmp.eq.s32.totalorder %s20, 0
    %p286 = por %p284, %p285
    %p287 = scmp.ne.s32.totalorder %s279, %s281
    %p288 = scmp.eq.s32.totalorder %s25, 1
    %p289 = por %p287, %p288
    %p290 = scmp.ne.s32.totalorder %s281, %s282
    %p291 = scmp.eq.s32.totalorder %s25, 0
    %p292 = por %p290, %p291
    %p293 = scmp.ne.s32.totalorder %s281, %s282
    %p294 = scmp.eq.s32.totalorder %s26, 1
    %p295 = por %p293, %p294
    %p297 = scmp.ne.s32.totalorder %s282, %s296
    %p298 = scmp.eq.s32.totalorder %s26, 0
    %p299 = por %p297, %p298
    %s300 = ssub.s32 %s20, %s27
    %p301 = scmp.eq.s32.totalorder %s300, 0
    %s303 = sadd.s32 %s302, 1
    %s304 = scalar_select %p301, %s302, %s303
    %p307 = pneg %p301
    %p308 = scmp.eq.s32.totalorder %s20, 1
    %p309 = por %p307, %p308
    %p310 = scmp.ne.s32.totalorder %s302, %s305
    %p311 = scmp.eq.s32.totalorder %s20, 0
    %p312 = por %p310, %p311
    %p313 = scmp.ne.s32.totalorder %s302, %s305
    %p314 = scmp.eq.s32.totalorder %s25, 1
    %p315 = por %p313, %p314
    %p316 = scmp.ne.s32.totalorder %s305, %s306
    %p317 = scmp.eq.s32.totalorder %s25, 0
    %p318 = por %p316, %p317
    %p319 = scmp.ne.s32.totalorder %s305, %s306
    %p320 = scmp.eq.s32.totalorder %s26, 1
    %p321 = por %p319, %p320
    %p323 = scmp.ne.s32.totalorder %s306, %s322
    %p324 = scmp.eq.s32.totalorder %s26, 0
    %p325 = por %p323, %p324
    %s326 = ssub.s32 %s20, %s27
    %p327 = scmp.eq.s32.totalorder %s326, 0
    %s329 = sadd.s32 %s328, 1
    %s330 = scalar_select %p327, %s328, %s329
    %p333 = pneg %p327
    %p334 = scmp.eq.s32.totalorder %s20, 1
    %p335 = por %p333, %p334
    %p336 = scmp.ne.s32.totalorder %s328, %s331
    %p337 = scmp.eq.s32.totalorder %s20, 0
    %p338 = por %p336, %p337
    %p339 = scmp.ne.s32.totalorder %s328, %s331
    %p340 = scmp.eq.s32.totalorder %s25, 1
    %p341 = por %p339, %p340
    %p342 = scmp.ne.s32.totalorder %s331, %s332
    %p343 = scmp.eq.s32.totalorder %s25, 0
    %p344 = por %p342, %p343
    %p345 = scmp.ne.s32.totalorder %s331, %s332
    %p346 = scmp.eq.s32.totalorder %s26, 1
    %p347 = por %p345, %p346
    %p349 = scmp.ne.s32.totalorder %s332, %s348
    %p350 = scmp.eq.s32.totalorder %s26, 0
    %p351 = por %p349, %p350
    %p352 = scmp.le.s32.totalorder 1, %s20
    %p353 = scmp.lt.s32.totalorder %s20, 3
    %p354 = pnand %p352, %p353
    %p355 = pneg %p354
    // Predicated region
    $region9: #{_forward.1} parent=5 // pred_check
      _
    $region10: #{_forward.1} parent=5 // pred_check_branch
      %357 = sbr.rel (%p354) target = $region12
    $region11: #{_forward.1} parent=5 // pred_region
      %s358 = ssub.s32 %s20, 1
      // Predicated region
      $region13: #{_forward.1} parent=11 // pred_check
        %p359 = pneg %p145
      $region14: #{_forward.1} parent=11 // pred_check_branch
        %361 = sbr.rel (%p359) target = $region16
      $region15: #{_forward.1} parent=11 // pred_region
        _
      $region16: #{_forward.1} parent=11 // pred_fallthru
        _
      // Predicated region
      $region17: #{_forward.1} parent=11 // pred_check
        %p362 = pneg %p166
      $region18: #{_forward.1} parent=11 // pred_check_branch
        %364 = sbr.rel (%p362) target = $region20
      $region19: #{_forward.1} parent=11 // pred_region
        _
      $region20: #{_forward.1} parent=11 // pred_fallthru
        _
      // Predicated region
      $region21: #{_forward.1} parent=11 // pred_check
        %p365 = pneg %p187
      $region22: #{_forward.1} parent=11 // pred_check_branch
        %367 = sbr.rel (%p365) target = $region24
      $region23: #{_forward.1} parent=11 // pred_region
        _
      $region24: #{_forward.1} parent=11 // pred_fallthru
        _
      // Predicated region
      $region25: #{_forward.1} parent=11 // pred_check
        %p368 = pneg %p208
      $region26: #{_forward.1} parent=11 // pred_check_branch
        %370 = sbr.rel (%p368) target = $region28
      $region27: #{_forward.1} parent=11 // pred_region
        _
      $region28: #{_forward.1} parent=11 // pred_fallthru
        _
      // Predicated region
      $region29: #{_forward.1} parent=11 // pred_check
        %p371 = pneg %p229
      $region30: #{_forward.1} parent=11 // pred_check_branch
        %373 = sbr.rel (%p371) target = $region32
      $region31: #{_forward.1} parent=11 // pred_region
        _
      $region32: #{_forward.1} parent=11 // pred_fallthru
        _
      // Predicated region
      $region33: #{_forward.1} parent=11 // pred_check
        %p374 = pneg %p250
      $region34: #{_forward.1} parent=11 // pred_check_branch
        %376 = sbr.rel (%p374) target = $region36
      $region35: #{_forward.1} parent=11 // pred_region
        _
      $region36: #{_forward.1} parent=11 // pred_fallthru
        _
      // Predicated region
      $region37: #{_forward.1} parent=11 // pred_check
        %p377 = pneg %p271
      $region38: #{_forward.1} parent=11 // pred_check_branch
        %379 = sbr.rel (%p377) target = $region40
      $region39: #{_forward.1} parent=11 // pred_region
        _
      $region40: #{_forward.1} parent=11 // pred_fallthru
        _
      // Predicated region
      $region41: #{_forward.1} parent=11 // pred_check
        %p380 = pneg %p292
      $region42: #{_forward.1} parent=11 // pred_check_branch
        %382 = sbr.rel (%p380) target = $region44
      $region43: #{_forward.1} parent=11 // pred_region
        _
      $region44: #{_forward.1} parent=11 // pred_fallthru
        _
    $region12: #{_forward.1} parent=5 // pred_fallthru
      _
    %p383 = scmp.lt.s32.totalorder %s20, 2
    // Predicated region
    $region45: #{_forward.1} parent=5 // pred_check
      %p384 = pneg %p383
    $region46: #{_forward.1} parent=5 // pred_check_branch
      %386 = sbr.rel (%p384) target = $region48
    $region47: #{_forward.1} parent=5 // pred_region
      // Predicated region
      $region49: #{_forward.1} parent=47 // pred_check
        %p387 = pneg %p40
      $region50: #{_forward.1} parent=47 // pred_check_branch
        %389 = sbr.rel (%p387) target = $region52
      $region51: #{_forward.1} parent=47 // pred_region
        %p390 = scmp.lt.s32.totalorder %s20, 1
        %s391 = scalar_select %p390, %s20, 1
        %s392 = smul.addr %s391, 5
        %s393 = smul.addr %s392, 4
        %s394 = scalar_lea.vmem %s0, %s393
      $region52: #{_forward.1} parent=47 // pred_fallthru
        _
      // Predicated region
      $region53: #{_forward.1} parent=47 // pred_check
        %p395 = pneg %p66
      $region54: #{_forward.1} parent=47 // pred_check_branch
        %397 = sbr.rel (%p395) target = $region56
      $region55: #{_forward.1} parent=47 // pred_region
        %p398 = scmp.lt.s32.totalorder %s20, 1
        %s399 = scalar_select %p398, %s20, 1
        %s400 = smul.addr %s399, 5
        %s401 = smul.addr %s400, 8
        %s402 = scalar_lea.vmem %s1, %s401
      $region56: #{_forward.1} parent=47 // pred_fallthru
        _
      // Predicated region
      $region57: #{_forward.1} parent=47 // pred_check
        %p403 = pneg %p92
      $region58: #{_forward.1} parent=47 // pred_check_branch
        %405 = sbr.rel (%p403) target = $region60
      $region59: #{_forward.1} parent=47 // pred_region
        %p406 = scmp.lt.s32.totalorder %s20, 1
        %s407 = scalar_select %p406, %s20, 1
        %s408 = smul.addr %s407, 4
        %s409 = scalar_lea.vmem %s2, %s408
      $region60: #{_forward.1} parent=47 // pred_fallthru
        _
      // Predicated region
      $region61: #{_forward.1} parent=47 // pred_check
        %p410 = pneg %p118
      $region62: #{_forward.1} parent=47 // pred_check_branch
        %412 = sbr.rel (%p410) target = $region64
      $region63: #{_forward.1} parent=47 // pred_region
        %p413 = scmp.lt.s32.totalorder %s20, 1
        %s414 = scalar_select %p413, %s20, 1
        %s415 = smul.addr %s414, 8
        %s416 = scalar_lea.vmem %s3, %s415
      $region64: #{_forward.1} parent=47 // pred_fallthru
        _
    $region48: #{_forward.1} parent=5 // pred_fallthru
      _
    %p417 = scmp.le.s32.totalorder 1, %s20
    %p418 = scmp.lt.s32.totalorder %s20, 3
    %p419 = pnand %p417, %p418
    %p420 = pneg %p419
    // Predicated region
    $region65: #{_forward.1} parent=5 // pred_check
      _
    $region66: #{_forward.1} parent=5 // pred_check_branch
      %422 = sbr.rel (%p419) target = $region68
    $region67: #{_forward.1} parent=5 // pred_region
      %s423 = ssub.s32 %s20, 1
      %p424 = scmp.lt.s32.totalorder %s25, 1
      %s425 = scalar_select %p424, %s25, 1
      %s426 = smul.addr %s425, 5
      %s427 = smul.addr %s426, 4
      %s428 = scalar_lea.vmem %s0, %s427
      %p429 = pneg %p46
      %p430 = pneg %p43
      %p431 = scmp.lt.s32.totalorder %s25, 1
      %s432 = scalar_select %p431, %s25, 1
      %s433 = smul.addr %s432, 5
      %s434 = smul.addr %s433, 8
      %s435 = scalar_lea.vmem %s1, %s434
      %p436 = pneg %p72
      %p437 = pneg %p69
      %p438 = scmp.lt.s32.totalorder %s25, 1
      %s439 = scalar_select %p438, %s25, 1
      %s440 = smul.addr %s439, 4
      %s441 = scalar_lea.vmem %s2, %s440
      %p442 = pneg %p98
      %p443 = pneg %p95
      %p444 = scmp.lt.s32.totalorder %s25, 1
      %s445 = scalar_select %p444, %s25, 1
      %s446 = smul.addr %s445, 8
      %s447 = scalar_lea.vmem %s3, %s446
      %p448 = pneg %p124
      %p449 = pneg %p121
      %p450 = pneg %p145
      %p451 = pneg %p142
      %p452 = pneg %p166
      %p453 = pneg %p163
      %p454 = pneg %p187
      %p455 = pneg %p184
      %p456 = pneg %p208
      %p457 = pneg %p205
      %p458 = pneg %p229
      %p459 = pneg %p226
      %p460 = pneg %p250
      %p461 = pneg %p247
      %p462 = pneg %p271
      %p463 = pneg %p268
      %p464 = pneg %p292
      %p465 = pneg %p289
      %p466 = pneg %p318
      %p467 = pneg %p315
      %p468 = scmp.lt.s32.totalorder %s25, 1
      %s469 = scalar_select %p468, %s25, 1
      %s470 = smul.addr %s469, 8
      %s471 = scalar_lea.vmem %s12, %s470
      %p472 = pneg %p344
      %p473 = pneg %p341
      %p474 = scmp.lt.s32.totalorder %s25, 1
      %s475 = scalar_select %p474, %s25, 1
      %s476 = smul.addr %s475, 8
      %s477 = scalar_lea.vmem %s13, %s476
      %p478 = scmp.lt.s32.totalorder %s25, 1
      %s479 = scalar_select %p478, %s25, 1
      %s480 = smul.addr %s479, 5
      %s481 = smul.addr %s480, 4
      %s482 = scalar_lea.vmem %s0, %s481
      %p483 = scmp.lt.s32.totalorder %s25, 1
      %s484 = scalar_select %p483, %s25, 1
      %s485 = smul.addr %s484, 5
      %s486 = smul.addr %s485, 8
      %s487 = scalar_lea.vmem %s1, %s486
      %p488 = scmp.lt.s32.totalorder %s25, 1
      %s489 = scalar_select %p488, %s25, 1
      %s490 = smul.addr %s489, 4
      %s491 = scalar_lea.vmem %s2, %s490
      %p492 = scmp.lt.s32.totalorder %s25, 1
      %s493 = scalar_select %p492, %s25, 1
      %s494 = smul.addr %s493, 8
      %s495 = scalar_lea.vmem %s3, %s494
      %p496 = scmp.lt.s32.totalorder %s25, 1
      %s497 = scalar_select %p496, %s25, 1
      %s498 = smul.addr %s497, 8
      %s499 = scalar_lea.vmem %s12, %s498
      %p500 = scmp.lt.s32.totalorder %s25, 1
      %s501 = scalar_select %p500, %s25, 1
      %s502 = smul.addr %s501, 8
      %s503 = scalar_lea.vmem %s13, %s502
      %v505 = vld [vmem:[%s482] sm:$0xf]
      %v506 = vld [vmem:[%s482 + $0x4] sm:$0xf]
      %v507 = vld [vmem:[%s482 + $0x8] sm:$0xf]
      %v508 = vld [vmem:[%s482 + $0xc] sm:$0xf]
      %v509 = vld [vmem:[%s482 + $0x10] sm:$0xf]
      %v510 = vld [vmem:[%s4] sm:$0xf]
      %v511 = vld [vmem:[%s4 + $0x4] sm:$0xf]
      %v512 = vld [vmem:[%s6] sm:$0x1]
      %v514 = vperm.slane %v512, 0
      %v521 = vunpack.c.l.b16 %v505
      %v522 = vunpack.c.l.b16 %v506
      %v523 = vunpack.c.l.b16 %v507
      %v524 = vunpack.c.l.b16 %v508
      %v525 = vunpack.c.l.b16 %v509
      %v526 = vpack.c.b16 %v522, %v521
      %v527 = vpack.c.b16 %v524, %v523
      %v528 = vpack.c.b16 %v525, %v525
      %v531 = vunpack.c.l.b16 %v510
      %v532 = vunpack.c.l.b16 %v511
      %v533 = vpack.c.b16 %v532, %v531
      %vm535 = vcmask 130048
      %v537 = vsel %vm535, %v526, 0
      %v540 = vsel %vm535, %v527, 0
      %v543 = vsel %vm535, %v528, 0
      %545 = vmatpush.bf16.msra.mxu0 0
      %546 = vmatpush.bf16.msra.mxu0 0
      %547 = vmatpush.bf16.msra.mxu0 0
      %548 = vmatpush.bf16.msra.mxu0 0
      %549 = vmatpush.bf16.msra.mxu0 0
      %550 = vmatpush.bf16.msra.mxu0 0
      %551 = vmatpush.bf16.msra.mxu0 0
      %552 = vmatpush.bf16.msra.mxu0 %v533
      %553 = vmatmul.bf16.gmra.mxu0 %v537
      %v554 = vpop.f32.mrf.mxu0
      %v555 = vadd.f32 %v514, %v554
      %v556 = vpop.f32.mrf.mxu0
      %v557 = vadd.f32 %v514, %v556
      %558 = vmatmul.bf16.gmra.mxu0 %v540
      %v559 = vpop.f32.mrf.mxu0
      %v560 = vadd.f32 %v514, %v559
      %v561 = vpop.f32.mrf.mxu0
      %v562 = vadd.f32 %v514, %v561
      %563 = vmatmul.bf16.gmra.mxu0 %v543
      %v564 = vpop.f32.mrf.mxu0
      %v565 = vadd.f32 %v514, %v564
      %v566 = vpop.f32.mrf.mxu0
      %567 = vdwg.mxu0
      %v568 = vld [vmem:[%s5] sm:$0xf]
      %v569 = vld [vmem:[%s5 + $0x4] sm:$0xf]
      %v570 = vld [vmem:[%s5 + $0x8] sm:$0xf]
      %v571 = vld [vmem:[%s5 + $0xc] sm:$0xf]
      %v572 = vld [vmem:[%s487] sm:$0xff]
      %v573 = vld [vmem:[%s487 + $0x8] sm:$0xff]
      %v574 = vld [vmem:[%s487 + $0x10] sm:$0xff]
      %v575 = vld [vmem:[%s487 + $0x18] sm:$0xff]
      %v576 = vld [vmem:[%s487 + $0x20] sm:$0xff]
      %vm577 = vcmp.ne.f32.partialorder %v572, 0.0
      %vm578 = vcmp.ne.f32.partialorder %v573, 0.0
      %vm579 = vcmp.ne.f32.partialorder %v574, 0.0
      %vm580 = vcmp.ne.f32.partialorder %v575, 0.0
      %vm581 = vcmp.ne.f32.partialorder %v576, 0.0
      %v586 = vunpack.c.l.b16 %v568
      %v587 = vunpack.c.l.b16 %v569
      %v588 = vunpack.c.l.b16 %v570
      %v589 = vunpack.c.l.b16 %v571
      %v590 = vpack.c.b16 %v587, %v586
      %v591 = vpack.c.b16 %v589, %v588
      %vm594 = vcmask 261120
      %v596 = vsel %vm594, 0, 0
      %598 = vmatpush.bf16.msra.mxu0 0
      %599 = vmatpush.bf16.msra.mxu0 0
      %600 = vmatpush.bf16.msra.mxu0 0
      %601 = vmatpush.bf16.msra.mxu0 0
      %602 = vmatpush.bf16.msra.mxu0 0
      %603 = vmatpush.bf16.msra.mxu0 0
      %604 = vmatpush.bf16.msra.mxu0 %v591
      %605 = vmatpush.bf16.msra.mxu0 %v590
      %606 = vmatmul.bf16.gmra.mxu0 %v596
      %v607 = vpop.f32.mrf.mxu0
      %v608 = vadd.f32 0.0, %v607
      %v609 = vpop.f32.mrf.mxu0
      %610 = vdwg.mxu0
      %v611 = vadd.f32 %v555, %v608
      %v612 = vxor.u32 %v611, 2147483648
      %v613 = vmul.f32 %v612, 1.442695
      %v614 = vpow.pop %v613
      %v615 = vadd.f32 %v614, 1.0
      %v616 = vrcp.pop %v615
      %v617 = vmul.f32 %v615, %v616
      %v618 = vsub.f32 1.0, %v617
      %v619 = vmul.f32 %v616, %v618
      %v620 = vadd.f32 %v616, %v619
      %vm621 = vweird.f32 %v615
      %vm622 = vweird.f32 %v616
      %vm623 = vmor %vm621, %vm622
      %v624 = vsel %vm623, %v616, %v620
      %v625 = vand.u32 2147483647, %v615
      %vm626 = vcmp.eq.f32.partialorder %v625, 8.507059e+37
      %v627 = vand.u32 %v615, 2147483648
      %v628 = vor.u32 1.1754944e-38, %v627
      %v629 = vsel %vm626, %v628, %v624
      %v630 = vmul.f32 1.0, %v629
      %v631 = vtanh.pop %v611
      %v632 = vmul.f32 %v630, 0.0
      %634 = vrot.lane.b32.xlu0 %v631, 64
      %v635 = vpop.permute.xlu0 %634
      %v637 = vmul.f32 %v630, %v635
      %639 = vrot.lane.b32.xlu0 %v637, 32
      %v640 = vpop.permute.xlu0 %639
      %v642 = vadd.f32 %v632, %v640
      %v643 = vtanh.pop %v642
      %645 = vrot.lane.b32.xlu0 %v643, 64
      %v646 = vpop.permute.xlu0 %645
      %v648 = vmul.f32 %v630, %v646
      %v649 = vsel %vm577, 1, 0
      %650 = vset.pattern.permute.xlu0 0
      %651 = vperm.xlu0 %650, %v649
      %v652 = vpop.permute.xlu0 %651
      %vm653 = vcmp.eq.s32.totalorder %v652, 1
      %v654 = vsel %vm653, %v648, 0.0
      %v655 = vsel %vm653, %v642, 0.0
      %v656 = vpack.c.bf16 %v654, %v654
      %658 = vrot.lane.b32.xlu0 %v656, 32
      %v659 = vpop.permute.xlu0 %658
      %v661 = vsel %vm594, %v659, 0
      %663 = vmatpush.bf16.msra.mxu0 0
      %664 = vmatpush.bf16.msra.mxu0 0
      %665 = vmatpush.bf16.msra.mxu0 0
      %666 = vmatpush.bf16.msra.mxu0 0
      %667 = vmatpush.bf16.msra.mxu0 0
      %668 = vmatpush.bf16.msra.mxu0 0
      %669 = vmatpush.bf16.msra.mxu0 %v591
      %670 = vmatpush.bf16.msra.mxu0 %v590
      %671 = vmatmul.bf16.gmra.mxu0 %v661
      %v672 = vpop.f32.mrf.mxu0
      %v673 = vadd.f32 0.0, %v672
      %v674 = vpop.f32.mrf.mxu0
      %675 = vdwg.mxu0
      %v676 = vadd.f32 %v557, %v673
      %v677 = vxor.u32 %v676, 2147483648
      %v678 = vmul.f32 %v677, 1.442695
      %v679 = vpow.pop %v678
      %v680 = vadd.f32 %v679, 1.0
      %v681 = vrcp.pop %v680
      %v682 = vmul.f32 %v680, %v681
      %v683 = vsub.f32 1.0, %v682
      %v684 = vmul.f32 %v681, %v683
      %v685 = vadd.f32 %v681, %v684
      %vm686 = vweird.f32 %v680
      %vm687 = vweird.f32 %v681
      %vm688 = vmor %vm686, %vm687
      %v689 = vsel %vm688, %v681, %v685
      %v690 = vand.u32 2147483647, %v680
      %vm691 = vcmp.eq.f32.partialorder %v690, 8.507059e+37
      %v692 = vand.u32 %v680, 2147483648
      %v693 = vor.u32 1.1754944e-38, %v692
      %v694 = vsel %vm691, %v693, %v689
      %v695 = vmul.f32 1.0, %v694
      %v696 = vtanh.pop %v676
      %v697 = vmul.f32 %v695, %v655
      %699 = vrot.lane.b32.xlu0 %v696, 64
      %v700 = vpop.permute.xlu0 %699
      %v702 = vmul.f32 %v695, %v700
      %704 = vrot.lane.b32.xlu0 %v702, 32
      %v705 = vpop.permute.xlu0 %704
      %v707 = vadd.f32 %v697, %v705
      %v708 = vtanh.pop %v707
      %710 = vrot.lane.b32.xlu0 %v708, 64
      %v711 = vpop.permute.xlu0 %710
      %v713 = vmul.f32 %v695, %v711
      %v714 = vsel %vm578, 1, 0
      %715 = vset.pattern.permute.xlu0 0
      %716 = vperm.xlu0 %715, %v714
      %v717 = vpop.permute.xlu0 %716
      %vm718 = vcmp.eq.s32.totalorder %v717, 1
      %v719 = vsel %vm718, %v713, %v654
      %v720 = vsel %vm718, %v707, %v655
      %v721 = vpack.c.bf16 %v719, %v719
      %723 = vrot.lane.b32.xlu0 %v721, 32
      %v724 = vpop.permute.xlu0 %723
      %v726 = vsel %vm594, %v724, 0
      %728 = vmatpush.bf16.msra.mxu0 0
      %729 = vmatpush.bf16.msra.mxu0 0
      %730 = vmatpush.bf16.msra.mxu0 0
      %731 = vmatpush.bf16.msra.mxu0 0
      %732 = vmatpush.bf16.msra.mxu0 0
      %733 = vmatpush.bf16.msra.mxu0 0
      %734 = vmatpush.bf16.msra.mxu0 %v591
      %735 = vmatpush.bf16.msra.mxu0 %v590
      %736 = vmatmul.bf16.gmra.mxu0 %v726
      %v737 = vpop.f32.mrf.mxu0
      %v738 = vadd.f32 0.0, %v737
      %v739 = vpop.f32.mrf.mxu0
      %740 = vdwg.mxu0
      %v741 = vadd.f32 %v560, %v738
      %v742 = vxor.u32 %v741, 2147483648
      %v743 = vmul.f32 %v742, 1.442695
      %v744 = vpow.pop %v743
      %v745 = vadd.f32 %v744, 1.0
      %v746 = vrcp.pop %v745
      %v747 = vmul.f32 %v745, %v746
      %v748 = vsub.f32 1.0, %v747
      %v749 = vmul.f32 %v746, %v748
      %v750 = vadd.f32 %v746, %v749
      %vm751 = vweird.f32 %v745
      %vm752 = vweird.f32 %v746
      %vm753 = vmor %vm751, %vm752
      %v754 = vsel %vm753, %v746, %v750
      %v755 = vand.u32 2147483647, %v745
      %vm756 = vcmp.eq.f32.partialorder %v755, 8.507059e+37
      %v757 = vand.u32 %v745, 2147483648
      %v758 = vor.u32 1.1754944e-38, %v757
      %v759 = vsel %vm756, %v758, %v754
      %v760 = vmul.f32 1.0, %v759
      %v761 = vtanh.pop %v741
      %v762 = vmul.f32 %v760, %v720
      %764 = vrot.lane.b32.xlu0 %v761, 64
      %v765 = vpop.permute.xlu0 %764
      %v767 = vmul.f32 %v760, %v765
      %769 = vrot.lane.b32.xlu0 %v767, 32
      %v770 = vpop.permute.xlu0 %769
      %v772 = vadd.f32 %v762, %v770
      %v773 = vtanh.pop %v772
      %775 = vrot.lane.b32.xlu0 %v773, 64
      %v776 = vpop.permute.xlu0 %775
      %v778 = vmul.f32 %v760, %v776
      %v779 = vsel %vm579, 1, 0
      %780 = vset.pattern.permute.xlu0 0
      %781 = vperm.xlu0 %780, %v779
      %v782 = vpop.permute.xlu0 %781
      %vm783 = vcmp.eq.s32.totalorder %v782, 1
      %v784 = vsel %vm783, %v778, %v719
      %v785 = vsel %vm783, %v772, %v720
      %v786 = vpack.c.bf16 %v784, %v784
      %788 = vrot.lane.b32.xlu0 %v786, 32
      %v789 = vpop.permute.xlu0 %788
      %v791 = vsel %vm594, %v789, 0
      %793 = vmatpush.bf16.msra.mxu0 0
      %794 = vmatpush.bf16.msra.mxu0 0
      %795 = vmatpush.bf16.msra.mxu0 0
      %796 = vmatpush.bf16.msra.mxu0 0
      %797 = vmatpush.bf16.msra.mxu0 0
      %798 = vmatpush.bf16.msra.mxu0 0
      %799 = vmatpush.bf16.msra.mxu0 %v591
      %800 = vmatpush.bf16.msra.mxu0 %v590
      %801 = vmatmul.bf16.gmra.mxu0 %v791
      %v802 = vpop.f32.mrf.mxu0
      %v803 = vadd.f32 0.0, %v802
      %v804 = vpop.f32.mrf.mxu0
      %805 = vdwg.mxu0
      %v806 = vadd.f32 %v562, %v803
      %v807 = vxor.u32 %v806, 2147483648
      %v808 = vmul.f32 %v807, 1.442695
      %v809 = vpow.pop %v808
      %v810 = vadd.f32 %v809, 1.0
      %v811 = vrcp.pop %v810
      %v812 = vmul.f32 %v810, %v811
      %v813 = vsub.f32 1.0, %v812
      %v814 = vmul.f32 %v811, %v813
      %v815 = vadd.f32 %v811, %v814
      %vm816 = vweird.f32 %v810
      %vm817 = vweird.f32 %v811
      %vm818 = vmor %vm816, %vm817
      %v819 = vsel %vm818, %v811, %v815
      %v820 = vand.u32 2147483647, %v810
      %vm821 = vcmp.eq.f32.partialorder %v820, 8.507059e+37
      %v822 = vand.u32 %v810, 2147483648
      %v823 = vor.u32 1.1754944e-38, %v822
      %v824 = vsel %vm821, %v823, %v819
      %v825 = vmul.f32 1.0, %v824
      %v826 = vtanh.pop %v806
      %v827 = vmul.f32 %v825, %v785
      %829 = vrot.lane.b32.xlu0 %v826, 64
      %v830 = vpop.permute.xlu0 %829
      %v832 = vmul.f32 %v825, %v830
      %834 = vrot.lane.b32.xlu0 %v832, 32
      %v835 = vpop.permute.xlu0 %834
      %v837 = vadd.f32 %v827, %v835
      %v838 = vtanh.pop %v837
      %840 = vrot.lane.b32.xlu0 %v838, 64
      %v841 = vpop.permute.xlu0 %840
      %v843 = vmul.f32 %v825, %v841
      %v844 = vsel %vm580, 1, 0
      %845 = vset.pattern.permute.xlu0 0
      %846 = vperm.xlu0 %845, %v844
      %v847 = vpop.permute.xlu0 %846
      %vm848 = vcmp.eq.s32.totalorder %v847, 1
      %v849 = vsel %vm848, %v843, %v784
      %v850 = vsel %vm848, %v837, %v785
      %v851 = vpack.c.bf16 %v849, %v849
      %853 = vrot.lane.b32.xlu0 %v851, 32
      %v854 = vpop.permute.xlu0 %853
      %v856 = vsel %vm594, %v854, 0
      %858 = vmatpush.bf16.msra.mxu0 0
      %859 = vmatpush.bf16.msra.mxu0 0
      %860 = vmatpush.bf16.msra.mxu0 0
      %861 = vmatpush.bf16.msra.mxu0 0
      %862 = vmatpush.bf16.msra.mxu0 0
      %863 = vmatpush.bf16.msra.mxu0 0
      %864 = vmatpush.bf16.msra.mxu0 %v591
      %865 = vmatpush.bf16.msra.mxu0 %v590
      %866 = vmatmul.bf16.gmra.mxu0 %v856
      %v867 = vpop.f32.mrf.mxu0
      %v868 = vadd.f32 0.0, %v867
      %v869 = vpop.f32.mrf.mxu0
      %870 = vdwg.mxu0
      %v871 = vadd.f32 %v565, %v868
      %v872 = vxor.u32 %v871, 2147483648
      %v873 = vmul.f32 %v872, 1.442695
      %v874 = vpow.pop %v873
      %v875 = vadd.f32 %v874, 1.0
      %v876 = vrcp.pop %v875
      %v877 = vmul.f32 %v875, %v876
      %v878 = vsub.f32 1.0, %v877
      %v879 = vmul.f32 %v876, %v878
      %v880 = vadd.f32 %v876, %v879
      %vm881 = vweird.f32 %v875
      %vm882 = vweird.f32 %v876
      %vm883 = vmor %vm881, %vm882
      %v884 = vsel %vm883, %v876, %v880
      %v885 = vand.u32 2147483647, %v875
      %vm886 = vcmp.eq.f32.partialorder %v885, 8.507059e+37
      %v887 = vand.u32 %v875, 2147483648
      %v888 = vor.u32 1.1754944e-38, %v887
      %v889 = vsel %vm886, %v888, %v884
      %v890 = vmul.f32 1.0, %v889
      %v891 = vtanh.pop %v871
      %v892 = vmul.f32 %v890, %v850
      %894 = vrot.lane.b32.xlu0 %v891, 64
      %v895 = vpop.permute.xlu0 %894
      %v897 = vmul.f32 %v890, %v895
      %899 = vrot.lane.b32.xlu0 %v897, 32
      %v900 = vpop.permute.xlu0 %899
      %v902 = vadd.f32 %v892, %v900
      %v903 = vtanh.pop %v902
      %905 = vrot.lane.b32.xlu0 %v903, 64
      %v906 = vpop.permute.xlu0 %905
      %v908 = vmul.f32 %v890, %v906
      %v909 = vsel %vm581, 1, 0
      %910 = vset.pattern.permute.xlu0 0
      %911 = vperm.xlu0 %910, %v909
      %v912 = vpop.permute.xlu0 %911
      %vm913 = vcmp.eq.s32.totalorder %v912, 1
      %v914 = vsel %vm913, %v908, %v849
      %v915 = vld [vmem:[%s491] sm:$0xf]
      %v916 = vpack.c.bf16 %v914, %v914
      %v918 = vunpack.c.l.b16 %v916
      %v919 = vpack.c.b16 %v918, %v918
      %920 = vrot.lane.b32.xlu0 %v919, 48
      %v921 = vpop.permute.xlu0 %920
      %v924 = vsel %vm535, %v915, %v921
      %v925 = vlaneseq
      %v926 = vshrl.u32 %v925, 7
      %v927 = vlaneseq
      %v928 = vand.u32 %v927, 127
      %v929 = vadd.s32 %v926, %v928
      %vm930 = vcmp.eq.s32.totalorder %v929, 7
      %v931 = vsel %vm930, 1, 0
      %v932 = vcvt.s32.f32 %v931
      %v933 = vpack.c.bf16 %v932, %v932
      %vm934 = vcmask 64512
      %v936 = vsel %vm934, %v933, 0
      %vm938 = vcmask 1043456
      %v939 = vsel %vm938, %v924, 0
      %941 = vmatpush.bf16.msra.mxu0 0
      %942 = vmatpush.bf16.msra.mxu0 0
      %943 = vmatpush.bf16.msra.mxu0 0
      %944 = vmatpush.bf16.msra.mxu0 0
      %945 = vmatpush.bf16.msra.mxu0 0
      %946 = vmatpush.bf16.msra.mxu0 0
      %947 = vmatpush.bf16.msra.mxu0 0
      %948 = vmatpush.bf16.msra.mxu0 %v939
      %949 = vmatmul.bf16.gmra.mxu0 %v936
      %v950 = vpop.f32.mrf.mxu0
      %v951 = vadd.f32 0.0, %v950
      %v952 = vpop.f32.mrf.mxu0
      %953 = vdwg.mxu0
      %v954 = vpack.c.bf16 %v951, %v951
      %v956 = vunpack.c.l.b16 %v954
      %v957 = vpack.c.b16 %v956, %v956
      %958 = vrot.lane.b32.xlu0 %v957, 48
      %v959 = vpop.permute.xlu0 %958
      %vm960 = vcmask 392192
      %v962 = vsel %vm960, %v924, %v959
      %v963 = vld [vmem:[%s7] sm:$0xf]
      %v964 = vld [vmem:[%s7 + $0x4] sm:$0xf]
      %v965 = vld [vmem:[%s7 + $0x8] sm:$0xf]
      %v966 = vld [vmem:[%s7 + $0xc] sm:$0xf]
      %v967 = vld [vmem:[%s7 + $0x10] sm:$0xf]
      %v968 = vld [vmem:[%s7 + $0x14] sm:$0xf]
      %v969 = vld [vmem:[%s7 + $0x18] sm:$0xf]
      %v970 = vld [vmem:[%s7 + $0x1c] sm:$0xf]
      %v971 = vld [vmem:[%s7 + $0x20] sm:$0xf]
      %v972 = vld [vmem:[%s7 + $0x24] sm:$0xf]
      %v973 = vld [vmem:[%s7 + $0x28] sm:$0xf]
      %v974 = vld [vmem:[%s7 + $0x2c] sm:$0xf]
      %v975 = vld [vmem:[%s9] sm:$0x1]
      %v977 = vperm.slane %v975, 0
      %v991 = vunpack.c.l.b16 %v963
      %v992 = vunpack.c.l.b16 %v964
      %v993 = vunpack.c.l.b16 %v965
      %v994 = vunpack.c.l.b16 %v966
      %v995 = vunpack.c.l.b16 %v967
      %v996 = vunpack.c.l.b16 %v968
      %v997 = vunpack.c.l.b16 %v969
      %v998 = vunpack.c.l.b16 %v970
      %v999 = vunpack.c.l.b16 %v971
      %v1000 = vunpack.c.l.b16 %v972
      %v1001 = vunpack.c.l.b16 %v973
      %v1002 = vunpack.c.l.b16 %v974
      %v1003 = vpack.c.b16 %v992, %v991
      %v1004 = vpack.c.b16 %v994, %v993
      %v1005 = vpack.c.b16 %v996, %v995
      %v1006 = vpack.c.b16 %v998, %v997
      %v1007 = vpack.c.b16 %v1000, %v999
      %v1008 = vpack.c.b16 %v1002, %v1001
      %vm1015 = vcmask 785408
      %v1016 = vsel %vm1015, %v962, 0
      %1018 = vmatpush.bf16.msra.mxu0 0
      %1019 = vmatpush.bf16.msra.mxu0 0
      %1020 = vmatpush.bf16.msra.mxu0 %v1008
      %1021 = vmatpush.bf16.msra.mxu0 %v1007
      %1022 = vmatpush.bf16.msra.mxu0 %v1006
      %1023 = vmatpush.bf16.msra.mxu0 %v1005
      %1024 = vmatpush.bf16.msra.mxu0 %v1004
      %1025 = vmatpush.bf16.msra.mxu0 %v1003
      %1026 = vmatmul.bf16.gmra.mxu0 %v1016
      %v1027 = vpop.f32.mrf.mxu0
      %v1028 = vadd.f32 %v977, %v1027
      %v1029 = vpop.f32.mrf.mxu0
      %1030 = vdwg.mxu0
      %v1031 = vld [vmem:[%s8] sm:$0xf]
      %v1032 = vld [vmem:[%s8 + $0x4] sm:$0xf]
      %v1033 = vld [vmem:[%s8 + $0x8] sm:$0xf]
      %v1034 = vld [vmem:[%s8 + $0xc] sm:$0xf]
      %v1035 = vld [vmem:[%s495] sm:$0xff]
      %vm1036 = vcmp.ne.f32.partialorder %v1035, 0.0
      %v1041 = vunpack.c.l.b16 %v1031
      %v1042 = vunpack.c.l.b16 %v1032
      %v1043 = vunpack.c.l.b16 %v1033
      %v1044 = vunpack.c.l.b16 %v1034
      %v1045 = vpack.c.b16 %v1042, %v1041
      %v1046 = vpack.c.b16 %v1044, %v1043
      %1049 = vmatpush.bf16.msra.mxu0 0
      %1050 = vmatpush.bf16.msra.mxu0 0
      %1051 = vmatpush.bf16.msra.mxu0 0
      %1052 = vmatpush.bf16.msra.mxu0 0
      %1053 = vmatpush.bf16.msra.mxu0 0
      %1054 = vmatpush.bf16.msra.mxu0 0
      %1055 = vmatpush.bf16.msra.mxu0 %v1046
      %1056 = vmatpush.bf16.msra.mxu0 %v1045
      %1057 = vmatmul.bf16.gmra.mxu0 %v596
      %v1058 = vpop.f32.mrf.mxu0
      %v1059 = vadd.f32 0.0, %v1058
      %v1060 = vpop.f32.mrf.mxu0
      %1061 = vdwg.mxu0
      %v1062 = vadd.f32 %v1028, %v1059
      %v1063 = vxor.u32 %v1062, 2147483648
      %v1064 = vmul.f32 %v1063, 1.442695
      %v1065 = vpow.pop %v1064
      %v1066 = vadd.f32 %v1065, 1.0
      %v1067 = vrcp.pop %v1066
      %v1068 = vmul.f32 %v1066, %v1067
      %v1069 = vsub.f32 1.0, %v1068
      %v1070 = vmul.f32 %v1067, %v1069
      %v1071 = vadd.f32 %v1067, %v1070
      %vm1072 = vweird.f32 %v1066
      %vm1073 = vweird.f32 %v1067
      %vm1074 = vmor %vm1072, %vm1073
      %v1075 = vsel %vm1074, %v1067, %v1071
      %v1076 = vand.u32 2147483647, %v1066
      %vm1077 = vcmp.eq.f32.partialorder %v1076, 8.507059e+37
      %v1078 = vand.u32 %v1066, 2147483648
      %v1079 = vor.u32 1.1754944e-38, %v1078
      %v1080 = vsel %vm1077, %v1079, %v1075
      %v1081 = vmul.f32 1.0, %v1080
      %v1082 = vtanh.pop %v1062
      %v1083 = vmul.f32 %v1081, 0.0
      %1085 = vrot.lane.b32.xlu0 %v1082, 64
      %v1086 = vpop.permute.xlu0 %1085
      %v1088 = vmul.f32 %v1081, %v1086
      %1090 = vrot.lane.b32.xlu0 %v1088, 32
      %v1091 = vpop.permute.xlu0 %1090
      %v1093 = vadd.f32 %v1083, %v1091
      %v1094 = vtanh.pop %v1093
      %1096 = vrot.lane.b32.xlu0 %v1094, 64
      %v1097 = vpop.permute.xlu0 %1096
      %v1099 = vmul.f32 %v1081, %v1097
      %1101 = vrot.lane.b32.xlu0 %v1099, 32
      %v1102 = vpop.permute.xlu0 %1101
      %v1104 = vsel %vm1036, %v1102, 0.0
      %1106 = vrot.lane.b32.xlu0 %v1093, 96
      %v1107 = vpop.permute.xlu0 %1106
      %v1109 = vsel %vm1036, %v1107, 0.0
      %v1110 = vpack.c.bf16 %v1104, %v1104
      %v1112 = vsel %vm594, %v1110, 0
      %1114 = vmatpush.bf16.msra.mxu0 0
      %1115 = vmatpush.bf16.msra.mxu0 0
      %1116 = vmatpush.bf16.msra.mxu0 0
      %1117 = vmatpush.bf16.msra.mxu0 0
      %1118 = vmatpush.bf16.msra.mxu0 0
      %1119 = vmatpush.bf16.msra.mxu0 0
      %1120 = vmatpush.bf16.msra.mxu0 %v1046
      %1121 = vmatpush.bf16.msra.mxu0 %v1045
      %1122 = vmatmul.bf16.gmra.mxu0 %v1112
      %v1123 = vpop.f32.mrf.mxu0
      %v1124 = vadd.f32 0.0, %v1123
      %v1125 = vpop.f32.mrf.mxu0
      %1126 = vdwg.mxu0
      %v1128 = vrot.slane %v1124, 7
      %v1130 = vadd.f32 %v1028, %v1128
      %v1131 = vxor.u32 %v1130, 2147483648
      %v1132 = vmul.f32 %v1131, 1.442695
      %v1133 = vpow.pop %v1132
      %v1134 = vadd.f32 %v1133, 1.0
      %v1135 = vrcp.pop %v1134
      %v1136 = vmul.f32 %v1134, %v1135
      %v1137 = vsub.f32 1.0, %v1136
      %v1138 = vmul.f32 %v1135, %v1137
      %v1139 = vadd.f32 %v1135, %v1138
      %vm1140 = vweird.f32 %v1134
      %vm1141 = vweird.f32 %v1135
      %vm1142 = vmor %vm1140, %vm1141
      %v1143 = vsel %vm1142, %v1135, %v1139
      %v1144 = vand.u32 2147483647, %v1134
      %vm1145 = vcmp.eq.f32.partialorder %v1144, 8.507059e+37
      %v1146 = vand.u32 %v1134, 2147483648
      %v1147 = vor.u32 1.1754944e-38, %v1146
      %v1148 = vsel %vm1145, %v1147, %v1143
      %v1149 = vmul.f32 1.0, %v1148
      %v1150 = vtanh.pop %v1130
      %v1152 = vrot.slane %v1109, 7
      %1153 = vrot.lane.b32.xlu0 %v1152, 32
      %v1154 = vpop.permute.xlu0 %1153
      %v1156 = vmul.f32 %v1149, %v1154
      %1158 = vrot.lane.b32.xlu0 %v1150, 64
      %v1159 = vpop.permute.xlu0 %1158
      %v1161 = vmul.f32 %v1149, %v1159
      %1163 = vrot.lane.b32.xlu0 %v1161, 32
      %v1164 = vpop.permute.xlu0 %1163
      %v1166 = vadd.f32 %v1156, %v1164
      %v1167 = vtanh.pop %v1166
      %1169 = vrot.lane.b32.xlu0 %v1167, 64
      %v1170 = vpop.permute.xlu0 %1169
      %v1172 = vmul.f32 %v1149, %v1170
      %1174 = vrot.lane.b32.xlu0 %v1172, 32
      %v1175 = vpop.permute.xlu0 %1174
      %v1178 = vrot.slane %v1104, 7
      %v1180 = vsel %vm1036, %v1175, %v1178
      %1182 = vrot.lane.b32.xlu0 %v1166, 96
      %v1183 = vpop.permute.xlu0 %1182
      %v1186 = vsel %vm1036, %v1183, %v1152
      %v1187 = vpack.c.bf16 %v1180, %v1180
      %v1189 = vshrl.u32 %v1187, 16
      %v1192 = vsel %vm594, %v1189, 0
      %1194 = vmatpush.bf16.msra.mxu0 0
      %1195 = vmatpush.bf16.msra.mxu0 0
      %1196 = vmatpush.bf16.msra.mxu0 0
      %1197 = vmatpush.bf16.msra.mxu0 0
      %1198 = vmatpush.bf16.msra.mxu0 0
      %1199 = vmatpush.bf16.msra.mxu0 0
      %1200 = vmatpush.bf16.msra.mxu0 %v1046
      %1201 = vmatpush.bf16.msra.mxu0 %v1045
      %1202 = vmatmul.bf16.gmra.mxu0 %v1192
      %v1203 = vpop.f32.mrf.mxu0
      %v1204 = vadd.f32 0.0, %v1203
      %v1205 = vpop.f32.mrf.mxu0
      %1206 = vdwg.mxu0
      %v1208 = vrot.slane %v1204, 6
      %v1210 = vadd.f32 %v1028, %v1208
      %v1211 = vxor.u32 %v1210, 2147483648
      %v1212 = vmul.f32 %v1211, 1.442695
      %v1213 = vpow.pop %v1212
      %v1214 = vadd.f32 %v1213, 1.0
      %v1215 = vrcp.pop %v1214
      %v1216 = vmul.f32 %v1214, %v1215
      %v1217 = vsub.f32 1.0, %v1216
      %v1218 = vmul.f32 %v1215, %v1217
      %v1219 = vadd.f32 %v1215, %v1218
      %vm1220 = vweird.f32 %v1214
      %vm1221 = vweird.f32 %v1215
      %vm1222 = vmor %vm1220, %vm1221
      %v1223 = vsel %vm1222, %v1215, %v1219
      %v1224 = vand.u32 2147483647, %v1214
      %vm1225 = vcmp.eq.f32.partialorder %v1224, 8.507059e+37
      %v1226 = vand.u32 %v1214, 2147483648
      %v1227 = vor.u32 1.1754944e-38, %v1226
      %v1228 = vsel %vm1225, %v1227, %v1223
      %v1229 = vmul.f32 1.0, %v1228
      %v1230 = vtanh.pop %v1210
      %v1232 = vrot.slane %v1186, 7
      %1233 = vrot.lane.b32.xlu0 %v1232, 32
      %v1234 = vpop.permute.xlu0 %1233
      %v1236 = vmul.f32 %v1229, %v1234
      %1238 = vrot.lane.b32.xlu0 %v1230, 64
      %v1239 = vpop.permute.xlu0 %1238
      %v1241 = vmul.f32 %v1229, %v1239
      %1243 = vrot.lane.b32.xlu0 %v1241, 32
      %v1244 = vpop.permute.xlu0 %1243
      %v1246 = vadd.f32 %v1236, %v1244
      %v1247 = vtanh.pop %v1246
      %1249 = vrot.lane.b32.xlu0 %v1247, 64
      %v1250 = vpop.permute.xlu0 %1249
      %v1252 = vmul.f32 %v1229, %v1250
      %1254 = vrot.lane.b32.xlu0 %v1252, 32
      %v1255 = vpop.permute.xlu0 %1254
      %v1258 = vrot.slane %v1180, 7
      %v1260 = vsel %vm1036, %v1255, %v1258
      %1262 = vrot.lane.b32.xlu0 %v1246, 96
      %v1263 = vpop.permute.xlu0 %1262
      %v1266 = vsel %vm1036, %v1263, %v1232
      %v1267 = vpack.c.bf16 %v1260, %v1260
      %v1269 = vrot.slane %v1267, 1
      %v1271 = vsel %vm594, %v1269, 0
      %1273 = vmatpush.bf16.msra.mxu0 0
      %1274 = vmatpush.bf16.msra.mxu0 0
      %1275 = vmatpush.bf16.msra.mxu0 0
      %1276 = vmatpush.bf16.msra.mxu0 0
      %1277 = vmatpush.bf16.msra.mxu0 0
      %1278 = vmatpush.bf16.msra.mxu0 0
      %1279 = vmatpush.bf16.msra.mxu0 %v1046
      %1280 = vmatpush.bf16.msra.mxu0 %v1045
      %1281 = vmatmul.bf16.gmra.mxu0 %v1271
      %v1282 = vpop.f32.mrf.mxu0
      %v1283 = vadd.f32 0.0, %v1282
      %v1284 = vpop.f32.mrf.mxu0
      %1285 = vdwg.mxu0
      %v1287 = vrot.slane %v1283, 5
      %v1289 = vadd.f32 %v1028, %v1287
      %v1290 = vxor.u32 %v1289, 2147483648
      %v1291 = vmul.f32 %v1290, 1.442695
      %v1292 = vpow.pop %v1291
      %v1293 = vadd.f32 %v1292, 1.0
      %v1294 = vrcp.pop %v1293
      %v1295 = vmul.f32 %v1293, %v1294
      %v1296 = vsub.f32 1.0, %v1295
      %v1297 = vmul.f32 %v1294, %v1296
      %v1298 = vadd.f32 %v1294, %v1297
      %vm1299 = vweird.f32 %v1293
      %vm1300 = vweird.f32 %v1294
      %vm1301 = vmor %vm1299, %vm1300
      %v1302 = vsel %vm1301, %v1294, %v1298
      %v1303 = vand.u32 2147483647, %v1293
      %vm1304 = vcmp.eq.f32.partialorder %v1303, 8.507059e+37
      %v1305 = vand.u32 %v1293, 2147483648
      %v1306 = vor.u32 1.1754944e-38, %v1305
      %v1307 = vsel %vm1304, %v1306, %v1302
      %v1308 = vmul.f32 1.0, %v1307
      %v1309 = vtanh.pop %v1289
      %v1311 = vrot.slane %v1266, 7
      %1312 = vrot.lane.b32.xlu0 %v1311, 32
      %v1313 = vpop.permute.xlu0 %1312
      %v1315 = vmul.f32 %v1308, %v1313
      %1317 = vrot.lane.b32.xlu0 %v1309, 64
      %v1318 = vpop.permute.xlu0 %1317
      %v1320 = vmul.f32 %v1308, %v1318
      %1322 = vrot.lane.b32.xlu0 %v1320, 32
      %v1323 = vpop.permute.xlu0 %1322
      %v1325 = vadd.f32 %v1315, %v1323
      %v1326 = vtanh.pop %v1325
      %1328 = vrot.lane.b32.xlu0 %v1326, 64
      %v1329 = vpop.permute.xlu0 %1328
      %v1331 = vmul.f32 %v1308, %v1329
      %1333 = vrot.lane.b32.xlu0 %v1331, 32
      %v1334 = vpop.permute.xlu0 %1333
      %v1337 = vrot.slane %v1260, 7
      %v1339 = vsel %vm1036, %v1334, %v1337
      %1341 = vrot.lane.b32.xlu0 %v1325, 96
      %v1342 = vpop.permute.xlu0 %1341
      %v1345 = vsel %vm1036, %v1342, %v1311
      %v1346 = vpack.c.bf16 %v1339, %v1339
      %v1348 = vshrl.u32 %v1346, 16
      %v1350 = vrot.slane %v1348, 1
      %v1352 = vsel %vm594, %v1350, 0
      %1354 = vmatpush.bf16.msra.mxu0 0
      %1355 = vmatpush.bf16.msra.mxu0 0
      %1356 = vmatpush.bf16.msra.mxu0 0
      %1357 = vmatpush.bf16.msra.mxu0 0
      %1358 = vmatpush.bf16.msra.mxu0 0
      %1359 = vmatpush.bf16.msra.mxu0 0
      %1360 = vmatpush.bf16.msra.mxu0 %v1046
      %1361 = vmatpush.bf16.msra.mxu0 %v1045
      %1362 = vmatmul.bf16.gmra.mxu0 %v1352
      %v1363 = vpop.f32.mrf.mxu0
      %v1364 = vadd.f32 0.0, %v1363
      %v1365 = vpop.f32.mrf.mxu0
      %1366 = vdwg.mxu0
      %v1368 = vrot.slane %v1364, 4
      %v1370 = vadd.f32 %v1028, %v1368
      %v1371 = vxor.u32 %v1370, 2147483648
      %v1372 = vmul.f32 %v1371, 1.442695
      %v1373 = vpow.pop %v1372
      %v1374 = vadd.f32 %v1373, 1.0
      %v1375 = vrcp.pop %v1374
      %v1376 = vmul.f32 %v1374, %v1375
      %v1377 = vsub.f32 1.0, %v1376
      %v1378 = vmul.f32 %v1375, %v1377
      %v1379 = vadd.f32 %v1375, %v1378
      %vm1380 = vweird.f32 %v1374
      %vm1381 = vweird.f32 %v1375
      %vm1382 = vmor %vm1380, %vm1381
      %v1383 = vsel %vm1382, %v1375, %v1379
      %v1384 = vand.u32 2147483647, %v1374
      %vm1385 = vcmp.eq.f32.partialorder %v1384, 8.507059e+37
      %v1386 = vand.u32 %v1374, 2147483648
      %v1387 = vor.u32 1.1754944e-38, %v1386
      %v1388 = vsel %vm1385, %v1387, %v1383
      %v1389 = vmul.f32 1.0, %v1388
      %v1390 = vtanh.pop %v1370
      %v1392 = vrot.slane %v1345, 7
      %1393 = vrot.lane.b32.xlu0 %v1392, 32
      %v1394 = vpop.permute.xlu0 %1393
      %v1396 = vmul.f32 %v1389, %v1394
      %1398 = vrot.lane.b32.xlu0 %v1390, 64
      %v1399 = vpop.permute.xlu0 %1398
      %v1401 = vmul.f32 %v1389, %v1399
      %1403 = vrot.lane.b32.xlu0 %v1401, 32
      %v1404 = vpop.permute.xlu0 %1403
      %v1406 = vadd.f32 %v1396, %v1404
      %v1407 = vtanh.pop %v1406
      %1409 = vrot.lane.b32.xlu0 %v1407, 64
      %v1410 = vpop.permute.xlu0 %1409
      %v1412 = vmul.f32 %v1389, %v1410
      %1414 = vrot.lane.b32.xlu0 %v1412, 32
      %v1415 = vpop.permute.xlu0 %1414
      %v1418 = vrot.slane %v1339, 7
      %v1420 = vsel %vm1036, %v1415, %v1418
      %1422 = vrot.lane.b32.xlu0 %v1406, 96
      %v1423 = vpop.permute.xlu0 %1422
      %v1426 = vsel %vm1036, %v1423, %v1392
      %v1427 = vpack.c.bf16 %v1420, %v1420
      %v1429 = vrot.slane %v1427, 2
      %v1431 = vsel %vm594, %v1429, 0
      %1433 = vmatpush.bf16.msra.mxu0 0
      %1434 = vmatpush.bf16.msra.mxu0 0
      %1435 = vmatpush.bf16.msra.mxu0 0
      %1436 = vmatpush.bf16.msra.mxu0 0
      %1437 = vmatpush.bf16.msra.mxu0 0
      %1438 = vmatpush.bf16.msra.mxu0 0
      %1439 = vmatpush.bf16.msra.mxu0 %v1046
      %1440 = vmatpush.bf16.msra.mxu0 %v1045
      %1441 = vmatmul.bf16.gmra.mxu0 %v1431
      %v1442 = vpop.f32.mrf.mxu0
      %v1443 = vadd.f32 0.0, %v1442
      %v1444 = vpop.f32.mrf.mxu0
      %1445 = vdwg.mxu0
      %v1447 = vrot.slane %v1443, 3
      %v1449 = vadd.f32 %v1028, %v1447
      %v1450 = vxor.u32 %v1449, 2147483648
      %v1451 = vmul.f32 %v1450, 1.442695
      %v1452 = vpow.pop %v1451
      %v1453 = vadd.f32 %v1452, 1.0
      %v1454 = vrcp.pop %v1453
      %v1455 = vmul.f32 %v1453, %v1454
      %v1456 = vsub.f32 1.0, %v1455
      %v1457 = vmul.f32 %v1454, %v1456
      %v1458 = vadd.f32 %v1454, %v1457
      %vm1459 = vweird.f32 %v1453
      %vm1460 = vweird.f32 %v1454
      %vm1461 = vmor %vm1459, %vm1460
      %v1462 = vsel %vm1461, %v1454, %v1458
      %v1463 = vand.u32 2147483647, %v1453
      %vm1464 = vcmp.eq.f32.partialorder %v1463, 8.507059e+37
      %v1465 = vand.u32 %v1453, 2147483648
      %v1466 = vor.u32 1.1754944e-38, %v1465
      %v1467 = vsel %vm1464, %v1466, %v1462
      %v1468 = vmul.f32 1.0, %v1467
      %v1469 = vtanh.pop %v1449
      %v1471 = vrot.slane %v1426, 7
      %1472 = vrot.lane.b32.xlu0 %v1471, 32
      %v1473 = vpop.permute.xlu0 %1472
      %v1475 = vmul.f32 %v1468, %v1473
      %1477 = vrot.lane.b32.xlu0 %v1469, 64
      %v1478 = vpop.permute.xlu0 %1477
      %v1480 = vmul.f32 %v1468, %v1478
      %1482 = vrot.lane.b32.xlu0 %v1480, 32
      %v1483 = vpop.permute.xlu0 %1482
      %v1485 = vadd.f32 %v1475, %v1483
      %v1486 = vtanh.pop %v1485
      %1488 = vrot.lane.b32.xlu0 %v1486, 64
      %v1489 = vpop.permute.xlu0 %1488
      %v1491 = vmul.f32 %v1468, %v1489
      %1493 = vrot.lane.b32.xlu0 %v1491, 32
      %v1494 = vpop.permute.xlu0 %1493
      %v1497 = vrot.slane %v1420, 7
      %v1499 = vsel %vm1036, %v1494, %v1497
      %1501 = vrot.lane.b32.xlu0 %v1485, 96
      %v1502 = vpop.permute.xlu0 %1501
      %v1505 = vsel %vm1036, %v1502, %v1471
      %v1506 = vpack.c.bf16 %v1499, %v1499
      %v1508 = vshrl.u32 %v1506, 16
      %v1510 = vrot.slane %v1508, 2
      %v1512 = vsel %vm594, %v1510, 0
      %1514 = vmatpush.bf16.msra.mxu0 0
      %1515 = vmatpush.bf16.msra.mxu0 0
      %1516 = vmatpush.bf16.msra.mxu0 0
      %1517 = vmatpush.bf16.msra.mxu0 0
      %1518 = vmatpush.bf16.msra.mxu0 0
      %1519 = vmatpush.bf16.msra.mxu0 0
      %1520 = vmatpush.bf16.msra.mxu0 %v1046
      %1521 = vmatpush.bf16.msra.mxu0 %v1045
      %1522 = vmatmul.bf16.gmra.mxu0 %v1512
      %v1523 = vpop.f32.mrf.mxu0
      %v1524 = vadd.f32 0.0, %v1523
      %v1525 = vpop.f32.mrf.mxu0
      %1526 = vdwg.mxu0
      %v1528 = vrot.slane %v1524, 2
      %v1530 = vadd.f32 %v1028, %v1528
      %v1531 = vxor.u32 %v1530, 2147483648
      %v1532 = vmul.f32 %v1531, 1.442695
      %v1533 = vpow.pop %v1532
      %v1534 = vadd.f32 %v1533, 1.0
      %v1535 = vrcp.pop %v1534
      %v1536 = vmul.f32 %v1534, %v1535
      %v1537 = vsub.f32 1.0, %v1536
      %v1538 = vmul.f32 %v1535, %v1537
      %v1539 = vadd.f32 %v1535, %v1538
      %vm1540 = vweird.f32 %v1534
      %vm1541 = vweird.f32 %v1535
      %vm1542 = vmor %vm1540, %vm1541
      %v1543 = vsel %vm1542, %v1535, %v1539
      %v1544 = vand.u32 2147483647, %v1534
      %vm1545 = vcmp.eq.f32.partialorder %v1544, 8.507059e+37
      %v1546 = vand.u32 %v1534, 2147483648
      %v1547 = vor.u32 1.1754944e-38, %v1546
      %v1548 = vsel %vm1545, %v1547, %v1543
      %v1549 = vmul.f32 1.0, %v1548
      %v1550 = vtanh.pop %v1530
      %v1552 = vrot.slane %v1505, 7
      %1553 = vrot.lane.b32.xlu0 %v1552, 32
      %v1554 = vpop.permute.xlu0 %1553
      %v1556 = vmul.f32 %v1549, %v1554
      %1558 = vrot.lane.b32.xlu0 %v1550, 64
      %v1559 = vpop.permute.xlu0 %1558
      %v1561 = vmul.f32 %v1549, %v1559
      %1563 = vrot.lane.b32.xlu0 %v1561, 32
      %v1564 = vpop.permute.xlu0 %1563
      %v1566 = vadd.f32 %v1556, %v1564
      %v1567 = vtanh.pop %v1566
      %1569 = vrot.lane.b32.xlu0 %v1567, 64
      %v1570 = vpop.permute.xlu0 %1569
      %v1572 = vmul.f32 %v1549, %v1570
      %1574 = vrot.lane.b32.xlu0 %v1572, 32
      %v1575 = vpop.permute.xlu0 %1574
      %v1578 = vrot.slane %v1499, 7
      %v1580 = vsel %vm1036, %v1575, %v1578
      %1582 = vrot.lane.b32.xlu0 %v1566, 96
      %v1583 = vpop.permute.xlu0 %1582
      %v1586 = vsel %vm1036, %v1583, %v1552
      %v1587 = vpack.c.bf16 %v1580, %v1580
      %v1589 = vrot.slane %v1587, 3
      %v1591 = vsel %vm594, %v1589, 0
      %1593 = vmatpush.bf16.msra.mxu0 0
      %1594 = vmatpush.bf16.msra.mxu0 0
      %1595 = vmatpush.bf16.msra.mxu0 0
      %1596 = vmatpush.bf16.msra.mxu0 0
      %1597 = vmatpush.bf16.msra.mxu0 0
      %1598 = vmatpush.bf16.msra.mxu0 0
      %1599 = vmatpush.bf16.msra.mxu0 %v1046
      %1600 = vmatpush.bf16.msra.mxu0 %v1045
      %1601 = vmatmul.bf16.gmra.mxu0 %v1591
      %v1602 = vpop.f32.mrf.mxu0
      %v1603 = vadd.f32 0.0, %v1602
      %v1604 = vpop.f32.mrf.mxu0
      %1605 = vdwg.mxu0
      %v1607 = vrot.slane %v1603, 1
      %v1609 = vadd.f32 %v1028, %v1607
      %v1610 = vxor.u32 %v1609, 2147483648
      %v1611 = vmul.f32 %v1610, 1.442695
      %v1612 = vpow.pop %v1611
      %v1613 = vadd.f32 %v1612, 1.0
      %v1614 = vrcp.pop %v1613
      %v1615 = vmul.f32 %v1613, %v1614
      %v1616 = vsub.f32 1.0, %v1615
      %v1617 = vmul.f32 %v1614, %v1616
      %v1618 = vadd.f32 %v1614, %v1617
      %vm1619 = vweird.f32 %v1613
      %vm1620 = vweird.f32 %v1614
      %vm1621 = vmor %vm1619, %vm1620
      %v1622 = vsel %vm1621, %v1614, %v1618
      %v1623 = vand.u32 2147483647, %v1613
      %vm1624 = vcmp.eq.f32.partialorder %v1623, 8.507059e+37
      %v1625 = vand.u32 %v1613, 2147483648
      %v1626 = vor.u32 1.1754944e-38, %v1625
      %v1627 = vsel %vm1624, %v1626, %v1622
      %v1628 = vmul.f32 1.0, %v1627
      %v1629 = vtanh.pop %v1609
      %v1631 = vrot.slane %v1586, 7
      %1632 = vrot.lane.b32.xlu0 %v1631, 32
      %v1633 = vpop.permute.xlu0 %1632
      %v1635 = vmul.f32 %v1628, %v1633
      %1637 = vrot.lane.b32.xlu0 %v1629, 64
      %v1638 = vpop.permute.xlu0 %1637
      %v1640 = vmul.f32 %v1628, %v1638
      %1642 = vrot.lane.b32.xlu0 %v1640, 32
      %v1643 = vpop.permute.xlu0 %1642
      %v1645 = vadd.f32 %v1635, %v1643
      %v1646 = vtanh.pop %v1645
      %1648 = vrot.lane.b32.xlu0 %v1646, 64
      %v1649 = vpop.permute.xlu0 %1648
      %v1651 = vmul.f32 %v1628, %v1649
      %1653 = vrot.lane.b32.xlu0 %v1651, 32
      %v1654 = vpop.permute.xlu0 %1653
      %v1657 = vrot.slane %v1580, 7
      %v1659 = vsel %vm1036, %v1654, %v1657
      %vm1660 = vcmask 1040384
      %v1661 = vsel %vm1660, %v1104, %v1180
      %vm1662 = vcmask 1041408
      %v1663 = vsel %vm1662, %v1661, %v1260
      %vm1664 = vcmask 1042432
      %v1665 = vsel %vm1664, %v1663, %v1339
      %v1666 = vsel %vm938, %v1665, %v1420
      %vm1667 = vcmask 1044480
      %v1668 = vsel %vm1667, %v1666, %v1499
      %vm1669 = vcmask 1045504
      %v1670 = vsel %vm1669, %v1668, %v1580
      %vm1671 = vcmask 1046528
      %v1672 = vsel %vm1671, %v1670, %v1659
      %v1674 = vrot.slane %v1659, 7
      %v1676 = vrot.slane %v1580, 5
      %v1678 = vrot.slane %v1499, 3
      %v1680 = vrot.slane %v1420, 1
      %v1682 = vrot.slane %v1260, 5
      %v1684 = vrot.slane %v1180, 3
      %v1686 = vrot.slane %v1104, 1
      %v1688 = vsel %vm1660, %v1674, %v1676
      %v1689 = vsel %vm1662, %v1688, %v1678
      %v1690 = vsel %vm1664, %v1689, %v1680
      %v1691 = vsel %vm938, %v1690, %v1418
      %v1692 = vsel %vm1667, %v1691, %v1682
      %v1693 = vsel %vm1669, %v1692, %v1684
      %v1694 = vsel %vm1671, %v1693, %v1686
      %v1695 = vsel %vm535, %v1672, %v1694
      %v1696 = vpack.c.bf16 %v1695, %v1695
      %v1697 = vld [vmem:[%s10] sm:$0xff]
      %v1698 = vld [vmem:[%s10 + $0x8] sm:$0xff]
      %v1699 = vld [vmem:[%s10 + $0x10] sm:$0xff]
      %v1700 = vld [vmem:[%s10 + $0x18] sm:$0xff]
      %v1701 = vld [vmem:[%s11] sm:$0x3]
      %v1703 = vperm.slane %v1701, 0
      %v1704 = vperm.slane %v1701, 1
      %v1711 = vunpack.c.l.b16 %v1697
      %v1712 = vunpack.c.h.b16 %v1697
      %v1713 = vunpack.c.l.b16 %v1698
      %v1714 = vunpack.c.h.b16 %v1698
      %v1715 = vunpack.c.l.b16 %v1699
      %v1716 = vunpack.c.h.b16 %v1699
      %v1717 = vunpack.c.l.b16 %v1700
      %v1718 = vunpack.c.h.b16 %v1700
      %v1719 = vpack.c.b16 %v1713, %v1711
      %v1720 = vpack.c.b16 %v1714, %v1712
      %v1721 = vpack.c.b16 %v1717, %v1715
      %v1722 = vpack.c.b16 %v1718, %v1716
      %v1728 = vsel %vm594, %v1696, 0
      %1730 = vmatpush.bf16.msra.mxu0 0
      %1731 = vmatpush.bf16.msra.mxu0 0
      %1732 = vmatpush.bf16.msra.mxu0 0
      %1733 = vmatpush.bf16.msra.mxu0 0
      %1734 = vmatpush.bf16.msra.mxu0 0
      %1735 = vmatpush.bf16.msra.mxu0 0
      %1736 = vmatpush.bf16.msra.mxu0 %v1721
      %1737 = vmatpush.bf16.msra.mxu0 %v1719
      %1738 = vmatmul.bf16.gmra.mxu0 %v1728
      %v1739 = vpop.f32.mrf.mxu0
      %v1740 = vadd.f32 %v1703, %v1739
      %v1741 = vpop.f32.mrf.mxu0
      %1742 = vdwg.mxu0
      %1743 = vmatpush.bf16.msra.mxu0 0
      %1744 = vmatpush.bf16.msra.mxu0 0
      %1745 = vmatpush.bf16.msra.mxu0 0
      %1746 = vmatpush.bf16.msra.mxu0 0
      %1747 = vmatpush.bf16.msra.mxu0 0
      %1748 = vmatpush.bf16.msra.mxu0 0
      %1749 = vmatpush.bf16.msra.mxu0 %v1722
      %1750 = vmatpush.bf16.msra.mxu0 %v1720
      %1751 = vmatmul.bf16.gmra.mxu0 %v1728
      %v1752 = vpop.f32.mrf.mxu0
      %v1753 = vadd.f32 %v1704, %v1752
      %v1754 = vpop.f32.mrf.mxu0
      %1755 = vdwg.mxu0
      %1756 = vmax.xlane.f32.xlu0 %v1740
      %v1757 = vpop.xlane.xlu0 %1756
      %v1758 = vsub.f32 %v1740, %v1757
      %v1759 = vmul.f32 %v1758, 1.442695
      %v1760 = vpow.pop %v1759
      %1761 = vadd.xlane.f32.xlu0 %v1760
      %v1762 = vpop.xlane.xlu0 %1761
      %v1763 = vlog2.pop %v1762
      %v1764 = vmul.f32 %v1763, 0.6931472
      %v1765 = vsub.f32 %v1758, %v1764
      %1766 = vst [vmem:[%s499] sm:$0xff] %v1765
      %1767 = vmax.xlane.f32.xlu0 %v1753
      %v1768 = vpop.xlane.xlu0 %1767
      %v1769 = vsub.f32 %v1753, %v1768
      %v1770 = vmul.f32 %v1769, 1.442695
      %v1771 = vpow.pop %v1770
      %1772 = vadd.xlane.f32.xlu0 %v1771
      %v1773 = vpop.xlane.xlu0 %1772
      %v1774 = vlog2.pop %v1773
      %v1775 = vmul.f32 %v1774, 0.6931472
      %v1776 = vsub.f32 %v1769, %v1775
      %1777 = vst [vmem:[%s503] sm:$0xff] %v1776
      %p1778 = scmp.lt.s32.totalorder %s25, 1
      %s1779 = scalar_select %p1778, %s25, 1
      %s1780 = smul.addr %s1779, 8
      %s1781 = scalar_lea.vmem %s12, %s1780
      %p1782 = scmp.lt.s32.totalorder %s25, 1
      %s1783 = scalar_select %p1782, %s25, 1
      %s1784 = smul.addr %s1783, 8
      %s1785 = scalar_lea.vmem %s13, %s1784
      // Predicated region
      $region69: #{_forward.1} parent=67 // pred_check
        %p1786 = pneg %p315
      $region70: #{_forward.1} parent=67 // pred_check_branch
        %1788 = sbr.rel (%p1786) target = $region72
      $region71: #{_forward.1} parent=67 // pred_region
        _
      $region72: #{_forward.1} parent=67 // pred_fallthru
        _
      // Predicated region
      $region73: #{_forward.1} parent=67 // pred_check
        %p1789 = pneg %p341
      $region74: #{_forward.1} parent=67 // pred_check_branch
        %1791 = sbr.rel (%p1789) target = $region76
      $region75: #{_forward.1} parent=67 // pred_region
        _
      $region76: #{_forward.1} parent=67 // pred_fallthru
        _
    $region68: #{_forward.1} parent=5 // pred_fallthru
      _
    %p1792 = scmp.le.s32.totalorder 2, %s20
    // Predicated region
    $region77: #{_forward.1} parent=5 // pred_check
      %p1793 = pneg %p1792
    $region78: #{_forward.1} parent=5 // pred_check_branch
      %1795 = sbr.rel (%p1793) target = $region80
    $region79: #{_forward.1} parent=5 // pred_region
      %s1796 = ssub.s32 %s20, 2
      // Predicated region
      $region81: #{_forward.1} parent=79 // pred_check
        %p1797 = pneg %p321
      $region82: #{_forward.1} parent=79 // pred_check_branch
        %1799 = sbr.rel (%p1797) target = $region84
      $region83: #{_forward.1} parent=79 // pred_region
        %p1800 = scmp.lt.s32.totalorder %s26, 1
        %s1801 = scalar_select %p1800, %s26, 1
        %s1802 = smul.addr %s1801, 8
        %s1803 = scalar_lea.vmem %s12, %s1802
      $region84: #{_forward.1} parent=79 // pred_fallthru
        _
      // Predicated region
      $region85: #{_forward.1} parent=79 // pred_check
        %p1804 = pneg %p347
      $region86: #{_forward.1} parent=79 // pred_check_branch
        %1806 = sbr.rel (%p1804) target = $region88
      $region87: #{_forward.1} parent=79 // pred_region
        %p1807 = scmp.lt.s32.totalorder %s26, 1
        %s1808 = scalar_select %p1807, %s26, 1
        %s1809 = smul.addr %s1808, 8
        %s1810 = scalar_lea.vmem %s13, %s1809
      $region88: #{_forward.1} parent=79 // pred_fallthru
        _
    $region80: #{_forward.1} parent=5 // pred_fallthru
      _
  $region6: #{_forward.1} parent=0 // loop_footer
    %s24 = sadd.s32 1, %s20
  $region7: #{_forward.1} parent=0 // loop_footer_branch
    %19 = sbr.rel target = $region3
  $region8: #{_forward.1} parent=0 // loop_exit
    _

</llo_original>
